<compile_context>
chip_gen: v5e
topology: v5e:2x2
jax: 0.10.0
libtpu: 0.0.40
codegen_flags: <defaults>
</compile_context>

<pallas_src>
import functools

import jax
import jax.numpy as jnp
from jax.experimental import pallas as pl
from jax.experimental.pallas import tpu as pltpu

KSIZE = 7
PAD = 3                 # padding = 3 for kernel_size = 7
_REDUCE_CHUNK = 8       # sublane-aligned channel chunk for the streamed reduce


def _tree_sum(terms):
    """Pairwise (tree) sum to shorten dependence chains (ILP for the 4 VALUs)."""
    terms = list(terms)
    while len(terms) > 1:
        nxt = [terms[i] + terms[i + 1] for i in range(0, len(terms) - 1, 2)]
        if len(terms) % 2:
            nxt.append(terms[-1])
        terms = nxt
    return terms[0]


def _channel_sum_max(x_ref):
    """(sum, max) over the channel axis in f32, with bounded vreg live ranges."""
    NB, C, HW = x_ref.shape
    if C <= 4 * _REDUCE_CHUNK:
        xr = x_ref[...].astype(jnp.float32)
        return jnp.sum(xr, axis=1), jnp.max(xr, axis=1)

    n_full = C // _REDUCE_CHUNK
    rem = C % _REDUCE_CHUNK

    def body(t, carry):
        su, mx = carry
        c0 = pl.multiple_of(t * _REDUCE_CHUNK, _REDUCE_CHUNK)
        xc = x_ref[:, pl.ds(c0, _REDUCE_CHUNK), :].astype(jnp.float32)
        return su + jnp.sum(xc, axis=1), jnp.maximum(mx, jnp.max(xc, axis=1))

    su0 = jnp.zeros((NB, HW), jnp.float32)
    mx0 = jnp.full((NB, HW), -jnp.inf, jnp.float32)
    su, mx = jax.lax.fori_loop(0, n_full, body, (su0, mx0), unroll=True)
    if rem:
        xc = x_ref[:, pl.ds(n_full * _REDUCE_CHUNK, rem), :].astype(jnp.float32)
        su = su + jnp.sum(xc, axis=1)
        mx = jnp.maximum(mx, jnp.max(xc, axis=1))
    return su, mx


def spatial_attention_kernel(w_ref, mask_ref, x_ref, o_ref, *, W, native_mul):
    # w_ref   : SMEM (2*49,) f32  — conv weights flattened (in_ch, kh, kw);
    #           channel 0 (the "avg" channel) is pre-scaled by 1/C so the
    #           channel *sum* can be used directly (mean folded into weights).
    # mask_ref: VMEM (14, HWp) f32 — rows 0..6: column-validity masks for
    #           dj=-3..3; rows 7..13: row-validity masks for di=-3..3.
    # x_ref   : VMEM (NB, C, HWp) — lane-dense view of the input block.
    # o_ref   : VMEM (NB, C, HWp)
    NB, C, HW = x_ref.shape

    su, mx = _channel_sum_max(x_ref)                        # (NB, HWp) f32 each
    feat = (su, mx)

    # Stage 1: column shifts (lane rolls -> XLU slot) + column edge masks.
    g = []
    for c in range(2):
        for j, dj in enumerate(range(-PAD, PAD + 1)):
            v = feat[c]
            s = (-dj) % HW
            if s:
                v = pltpu.roll(v, shift=s, axis=1)
            if dj:
                v = v * mask_ref[j]
            g.append(v)

    # Stage 2: for each row offset di, a 14-term weighted sum (tree for ILP),
    # one roll by di*W (XLU) and a row edge mask.  The 7 row-offset partials
    # are independent, so the VALUs can co-issue across them.
    # TODO(synk): if a bundle dump shows VALU as the binding slot at realistic
    # shapes, move this 98-term weighted reduction onto the idle MXU (stack the
    # 14 maps and dot with a (7,14) weight matrix); at realistic C the kernel
    # is HBM-bound, so it is kept on the VALU here.
    partial = []
    for i, di in enumerate(range(-PAD, PAD + 1)):
        terms = []
        for c in range(2):
            for j in range(KSIZE):
                w = w_ref[c * KSIZE * KSIZE + i * KSIZE + j]
                terms.append(w * g[c * KSIZE + j])
        inner = _tree_sum(terms)
        s = (-di * W) % HW
        if s:
            inner = pltpu.roll(inner, shift=s, axis=1)
        if di:
            inner = inner * mask_ref[KSIZE + i]
        partial.append(inner)

    att = jax.nn.sigmoid(_tree_sum(partial))                # (NB, HWp), f32

    # Broadcast multiply over channels; re-read x from VMEM so no f32 copy of
    # the whole block stayed live across the conv above.
    xin = x_ref[...]
    if native_mul:   # bf16-native multiply on v6e/v7x when x is bf16
        o_ref[...] = (xin * att.astype(xin.dtype)[:, None, :]).astype(o_ref.dtype)
    else:
        o_ref[...] = (xin.astype(jnp.float32) * att[:, None, :]).astype(o_ref.dtype)


def _chip_info():
    """Generation-aware knobs: TensorCore count, VMEM budget, bf16 VPU support."""
    kind = ""
    try:
        dev = jax.devices()[0]
        if dev.platform == "tpu":
            kind = dev.device_kind.lower()
    except Exception:
        pass
    is_v7 = "v7" in kind
    is_v5e = ("v5e" in kind) or ("v5 lite" in kind) or ("v5lite" in kind)

    vmem_phys = (64 << 20) if is_v7 else (128 << 20)
    try:  # prefer the real number when the query is available (never exceed it)
        vmem_phys = min(vmem_phys, int(pltpu.get_tpu_info().vmem_capacity_bytes))
    except Exception:
        pass

    return dict(
        num_tc=2 if is_v7 else 1,
        vmem_budget=max(vmem_phys - (16 << 20), 16 << 20),  # compiler headroom
        bf16_math=bool(kind) and not is_v5e,                # v5e VPU/EUP lack bf16
    )


def _divisors(n):
    ds, i = set(), 1
    while i * i <= n:
        if n % i == 0:
            ds.add(i)
            ds.add(n // i)
        i += 1
    return sorted(ds)


def _pick_batch_tile(N, x_elem_bytes, f32_row_bytes, fixed_bytes, *,
                     sublane, num_tc, vmem_budget, target_bytes=3 << 20):
    """Batch elements folded per grid step.

    Priority (per perf review): (1) fill the 8/16 sublanes of every conv vreg,
    (2) balanced (even) step count when 2 TensorCores share the grid (v7x),
    (3) biggest block within the ~3 MiB HBM-pipelining target / VMEM budget.
    """
    per_nb = 4 * x_elem_bytes + f32_row_bytes        # 2x in + 2x out bufs + f32 maps
    budget_nb = max(1, int((vmem_budget - fixed_bytes) // max(per_nb, 1)))
    floor_nb = min(N, sublane, budget_nb)
    want_nb = min(N, budget_nb,
                  max(floor_nb, target_bytes // max(x_elem_bytes, 1)))
    if num_tc >= 2 and N // max(floor_nb, 1) >= 2:
        want_nb = max(floor_nb, min(want_nb, N // 2))  # keep >=2 steps for 2 TCs

    def key(nb):
        steps = N // nb
        balanced = (num_tc < 2) or steps == 1 or (steps % num_tc == 0)
        return (nb >= floor_nb, balanced, nb)

    return max((d for d in _divisors(N) if d <= want_nb), key=key)


def spatial_attention(x, conv_weight):
    """x: (N, C, H, W); conv_weight: (1, 2, 7, 7) (PyTorch Conv2d layout, no bias)."""
    N, C, H, W = x.shape
    HW = H * W
    HWp = ((HW + 127) // 128) * 128          # lane-dense (multiple of 128) spatial axis
    chip = _chip_info()

    # Fold mean's 1/C into the channel-0 (avg) weights; flatten for SMEM.
    w = conv_weight.astype(jnp.float32)
    w = w.at[:, 0].multiply(1.0 / C)
    w_flat = w.reshape(-1)                                    # (2*49,)

    # Host-precomputed edge-validity masks for the flattened-spatial conv
    # (keeps integer div/mod and mask construction out of the kernel).
    col = jnp.arange(HWp, dtype=jnp.int32) % W
    row = jnp.arange(HWp, dtype=jnp.int32) // W
    offs = jnp.arange(-PAD, PAD + 1, dtype=jnp.int32)         # (7,)
    col_masks = ((col[None, :] + offs[:, None] >= 0)
                 & (col[None, :] + offs[:, None] < W)).astype(jnp.float32)
    row_masks = ((row[None, :] + offs[:, None] >= 0)
                 & (row[None, :] + offs[:, None] < H)).astype(jnp.float32)
    masks = jnp.concatenate([col_masks, row_masks], axis=0)   # (14, HWp)

    x3 = x.reshape(N, C, HW)
    if HWp != HW:   # zero-pad the flattened spatial axis to a lane multiple
        x3 = jnp.pad(x3, ((0, 0), (0, 0), (0, HWp - HW)))

    itemsize = x.dtype.itemsize
    x_elem_bytes = C * HWp * itemsize              # one batch element of x
    f32_row_bytes = 40 * HWp * 4                   # f32 conv intermediates per element
    fixed_bytes = 2 * 2 * KSIZE * HWp * 4 + (8 << 20)  # masks (double-buffered) + slack
    nb = _pick_batch_tile(
        N, x_elem_bytes, f32_row_bytes, fixed_bytes,
        sublane=16 if itemsize == 2 else 8,
        num_tc=chip["num_tc"], vmem_budget=chip["vmem_budget"])

    work = 4 * nb * x_elem_bytes + nb * f32_row_bytes + 2 * 2 * KSIZE * HWp * 4
    vmem_limit = int(min(chip["vmem_budget"], max(32 << 20, work + (8 << 20))))
    # TODO(synk): for C*HWp so large that even nb=1 blows the VMEM budget (v7x
    # first), add a C-tiled two-pass variant (att producer over C tiles, then a
    # streaming multiply pass).

    native_mul = chip["bf16_math"] and x.dtype == jnp.bfloat16

    kernel = functools.partial(spatial_attention_kernel, W=W, native_mul=native_mul)
    out = pl.pallas_call(
        kernel,
        out_shape=jax.ShapeDtypeStruct((N, C, HWp), x.dtype),
        grid=(N // nb,),
        in_specs=[
            pl.BlockSpec(memory_space=pltpu.MemorySpace.SMEM),        # conv weights
            pl.BlockSpec((2 * KSIZE, HWp), lambda n: (0, 0)),         # edge masks
            pl.BlockSpec((nb, C, HWp), lambda n: (n, 0, 0)),          # x block
        ],
        out_specs=pl.BlockSpec((nb, C, HWp), lambda n: (n, 0, 0)),
        compiler_params=pltpu.CompilerParams(
            dimension_semantics=("parallel",),
            vmem_limit_bytes=vmem_limit,
        ),
    )(w_flat, masks, x3)

    if HWp != HW:
        out = out[:, :, :HW]
    return out.reshape(N, C, H, W)


def spatial_attention_reference(x, conv_weight):
    """Pure-JAX reference with PyTorch Conv2d (cross-correlation) semantics."""
    avg = jnp.mean(x, axis=1, keepdims=True)
    mx = jnp.max(x, axis=1, keepdims=True)
    feat = jnp.concatenate([avg, mx], axis=1)                 # (N, 2, H, W)
    featp = jnp.pad(feat, ((0, 0), (0, 0), (PAD, PAD), (PAD, PAD)))
    N, _, H, W = x.shape
    acc = jnp.zeros((N, H, W), jnp.float32)
    for c in range(2):
        for ki in range(KSIZE):
            for kj in range(KSIZE):
                acc = acc + conv_weight[0, c, ki, kj] * featp[:, c, ki:ki + H, kj:kj + W]
    att = jax.nn.sigmoid(acc)[:, None, :, :]
    return x * att


if __name__ == "__main__":
    key = jax.random.PRNGKey(0)
    kx, kw = jax.random.split(key)

    N, C, H, W = 2, 4, 16, 16
    x = jax.random.normal(kx, (N, C, H, W), dtype=jnp.float32)
    # Deterministic conv weight (shape (out=1, in=2, 7, 7), no bias).
    fan_in = 2 * KSIZE * KSIZE
    conv_weight = jax.random.normal(kw, (1, 2, KSIZE, KSIZE), dtype=jnp.float32) / jnp.sqrt(fan_in)

    out = jax.block_until_ready(spatial_attention(x, conv_weight))
    ref = spatial_attention_reference(x, conv_weight)

    assert out.shape == (N, C, H, W)
    assert jnp.allclose(out, ref, atol=1e-5, rtol=1e-5), "mismatch vs reference"

    print("KERNEL_OK")
</pallas_src>

<mosaic_0001>
module attributes {stable_mosaic.version = 11 : i64} {
  func.func @spatial_attention_kernel(%arg0: i32, %arg1: memref<98xf32, #tpu.memory_space<smem>>, %arg2: memref<14x256xf32, #tpu.memory_space<vmem>>, %arg3: memref<2x4x256xf32, #tpu.memory_space<vmem>>, %arg4: memref<2x4x256xf32, #tpu.memory_space<vmem>>) attributes {dimension_semantics = [#tpu.dimension_semantics<parallel>], iteration_bounds = array<i64: 1>, scalar_prefetch = 0 : i64, scratch_operands = 0 : i64, tpu.core_type = #tpu.core_type<tc>, window_params = [{transform_indices = @transform_0, window_bounds = array<i64: 98>}, {pipeline_mode = #tpu.pipeline_mode<synchronous>, transform_indices = @transform_1, window_bounds = array<i64: 14, 256>}, {transform_indices = @transform_2, window_bounds = array<i64: 2, 4, 256>}, {transform_indices = @transform_3, window_bounds = array<i64: 2, 4, 256>}]} {
    %c0 = arith.constant 0 : index
    %c0_0 = arith.constant 0 : index
    %c0_1 = arith.constant 0 : index
    %0 = vector.load %arg3[%c0, %c0_0, %c0_1] : memref<2x4x256xf32, #tpu.memory_space<vmem>>, vector<2x4x256xf32>
    %cst = arith.constant dense<0.000000e+00> : vector<2x256xf32>
    %1 = vector.multi_reduction <add>, %0, %cst [1] : vector<2x4x256xf32> to vector<2x256xf32>
    %cst_2 = arith.constant dense<0xFF800000> : vector<2x256xf32>
    %2 = vector.multi_reduction <maximumf>, %0, %cst_2 [1] : vector<2x4x256xf32> to vector<2x256xf32>
    %c3_i32 = arith.constant 3 : i32
    %3 = tpu.dynamic_rotate %1 by %c3_i32 dim 1 : vector<2x256xf32>, i32 -> vector<2x256xf32>
    %c0_3 = arith.constant 0 : index
    %c0_4 = arith.constant 0 : index
    %4 = vector.load %arg2[%c0_3, %c0_4] : memref<14x256xf32, #tpu.memory_space<vmem>>, vector<1x256xf32>
    %5 = vector.shape_cast %4 : vector<1x256xf32> to vector<256xf32>
    %6 = vector.shape_cast %5 : vector<256xf32> to vector<1x256xf32>
    %7 = vector.broadcast %6 : vector<1x256xf32> to vector<2x256xf32>
    %8 = arith.mulf %3, %7 : vector<2x256xf32>
    %c2_i32 = arith.constant 2 : i32
    %9 = tpu.dynamic_rotate %1 by %c2_i32 dim 1 : vector<2x256xf32>, i32 -> vector<2x256xf32>
    %c1 = arith.constant 1 : index
    %c0_5 = arith.constant 0 : index
    %10 = vector.load %arg2[%c1, %c0_5] : memref<14x256xf32, #tpu.memory_space<vmem>>, vector<1x256xf32>
    %11 = vector.shape_cast %10 : vector<1x256xf32> to vector<256xf32>
    %12 = vector.shape_cast %11 : vector<256xf32> to vector<1x256xf32>
    %13 = vector.broadcast %12 : vector<1x256xf32> to vector<2x256xf32>
    %14 = arith.mulf %9, %13 : vector<2x256xf32>
    %c1_i32 = arith.constant 1 : i32
    %15 = tpu.dynamic_rotate %1 by %c1_i32 dim 1 : vector<2x256xf32>, i32 -> vector<2x256xf32>
    %c2 = arith.constant 2 : index
    %c0_6 = arith.constant 0 : index
    %16 = vector.load %arg2[%c2, %c0_6] : memref<14x256xf32, #tpu.memory_space<vmem>>, vector<1x256xf32>
    %17 = vector.shape_cast %16 : vector<1x256xf32> to vector<256xf32>
    %18 = vector.shape_cast %17 : vector<256xf32> to vector<1x256xf32>
    %19 = vector.broadcast %18 : vector<1x256xf32> to vector<2x256xf32>
    %20 = arith.mulf %15, %19 : vector<2x256xf32>
    %c255_i32 = arith.constant 255 : i32
    %21 = tpu.dynamic_rotate %1 by %c255_i32 dim 1 : vector<2x256xf32>, i32 -> vector<2x256xf32>
    %c4 = arith.constant 4 : index
    %c0_7 = arith.constant 0 : index
    %22 = vector.load %arg2[%c4, %c0_7] : memref<14x256xf32, #tpu.memory_space<vmem>>, vector<1x256xf32>
    %23 = vector.shape_cast %22 : vector<1x256xf32> to vector<256xf32>
    %24 = vector.shape_cast %23 : vector<256xf32> to vector<1x256xf32>
    %25 = vector.broadcast %24 : vector<1x256xf32> to vector<2x256xf32>
    %26 = arith.mulf %21, %25 : vector<2x256xf32>
    %c254_i32 = arith.constant 254 : i32
    %27 = tpu.dynamic_rotate %1 by %c254_i32 dim 1 : vector<2x256xf32>, i32 -> vector<2x256xf32>
    %c5 = arith.constant 5 : index
    %c0_8 = arith.constant 0 : index
    %28 = vector.load %arg2[%c5, %c0_8] : memref<14x256xf32, #tpu.memory_space<vmem>>, vector<1x256xf32>
    %29 = vector.shape_cast %28 : vector<1x256xf32> to vector<256xf32>
    %30 = vector.shape_cast %29 : vector<256xf32> to vector<1x256xf32>
    %31 = vector.broadcast %30 : vector<1x256xf32> to vector<2x256xf32>
    %32 = arith.mulf %27, %31 : vector<2x256xf32>
    %c253_i32 = arith.constant 253 : i32
    %33 = tpu.dynamic_rotate %1 by %c253_i32 dim 1 : vector<2x256xf32>, i32 -> vector<2x256xf32>
    %c6 = arith.constant 6 : index
    %c0_9 = arith.constant 0 : index
    %34 = vector.load %arg2[%c6, %c0_9] : memref<14x256xf32, #tpu.memory_space<vmem>>, vector<1x256xf32>
    %35 = vector.shape_cast %34 : vector<1x256xf32> to vector<256xf32>
    %36 = vector.shape_cast %35 : vector<256xf32> to vector<1x256xf32>
    %37 = vector.broadcast %36 : vector<1x256xf32> to vector<2x256xf32>
    %38 = arith.mulf %33, %37 : vector<2x256xf32>
    %c3_i32_10 = arith.constant 3 : i32
    %39 = tpu.dynamic_rotate %2 by %c3_i32_10 dim 1 : vector<2x256xf32>, i32 -> vector<2x256xf32>
    %c0_11 = arith.constant 0 : index
    %c0_12 = arith.constant 0 : index
    %40 = vector.load %arg2[%c0_11, %c0_12] : memref<14x256xf32, #tpu.memory_space<vmem>>, vector<1x256xf32>
    %41 = vector.shape_cast %40 : vector<1x256xf32> to vector<256xf32>
    %42 = vector.shape_cast %41 : vector<256xf32> to vector<1x256xf32>
    %43 = vector.broadcast %42 : vector<1x256xf32> to vector<2x256xf32>
    %44 = arith.mulf %39, %43 : vector<2x256xf32>
    %c2_i32_13 = arith.constant 2 : i32
    %45 = tpu.dynamic_rotate %2 by %c2_i32_13 dim 1 : vector<2x256xf32>, i32 -> vector<2x256xf32>
    %c1_14 = arith.constant 1 : index
    %c0_15 = arith.constant 0 : index
    %46 = vector.load %arg2[%c1_14, %c0_15] : memref<14x256xf32, #tpu.memory_space<vmem>>, vector<1x256xf32>
    %47 = vector.shape_cast %46 : vector<1x256xf32> to vector<256xf32>
    %48 = vector.shape_cast %47 : vector<256xf32> to vector<1x256xf32>
    %49 = vector.broadcast %48 : vector<1x256xf32> to vector<2x256xf32>
    %50 = arith.mulf %45, %49 : vector<2x256xf32>
    %c1_i32_16 = arith.constant 1 : i32
    %51 = tpu.dynamic_rotate %2 by %c1_i32_16 dim 1 : vector<2x256xf32>, i32 -> vector<2x256xf32>
    %c2_17 = arith.constant 2 : index
    %c0_18 = arith.constant 0 : index
    %52 = vector.load %arg2[%c2_17, %c0_18] : memref<14x256xf32, #tpu.memory_space<vmem>>, vector<1x256xf32>
    %53 = vector.shape_cast %52 : vector<1x256xf32> to vector<256xf32>
    %54 = vector.shape_cast %53 : vector<256xf32> to vector<1x256xf32>
    %55 = vector.broadcast %54 : vector<1x256xf32> to vector<2x256xf32>
    %56 = arith.mulf %51, %55 : vector<2x256xf32>
    %c255_i32_19 = arith.constant 255 : i32
    %57 = tpu.dynamic_rotate %2 by %c255_i32_19 dim 1 : vector<2x256xf32>, i32 -> vector<2x256xf32>
    %c4_20 = arith.constant 4 : index
    %c0_21 = arith.constant 0 : index
    %58 = vector.load %arg2[%c4_20, %c0_21] : memref<14x256xf32, #tpu.memory_space<vmem>>, vector<1x256xf32>
    %59 = vector.shape_cast %58 : vector<1x256xf32> to vector<256xf32>
    %60 = vector.shape_cast %59 : vector<256xf32> to vector<1x256xf32>
    %61 = vector.broadcast %60 : vector<1x256xf32> to vector<2x256xf32>
    %62 = arith.mulf %57, %61 : vector<2x256xf32>
    %c254_i32_22 = arith.constant 254 : i32
    %63 = tpu.dynamic_rotate %2 by %c254_i32_22 dim 1 : vector<2x256xf32>, i32 -> vector<2x256xf32>
    %c5_23 = arith.constant 5 : index
    %c0_24 = arith.constant 0 : index
    %64 = vector.load %arg2[%c5_23, %c0_24] : memref<14x256xf32, #tpu.memory_space<vmem>>, vector<1x256xf32>
    %65 = vector.shape_cast %64 : vector<1x256xf32> to vector<256xf32>
    %66 = vector.shape_cast %65 : vector<256xf32> to vector<1x256xf32>
    %67 = vector.broadcast %66 : vector<1x256xf32> to vector<2x256xf32>
    %68 = arith.mulf %63, %67 : vector<2x256xf32>
    %c253_i32_25 = arith.constant 253 : i32
    %69 = tpu.dynamic_rotate %2 by %c253_i32_25 dim 1 : vector<2x256xf32>, i32 -> vector<2x256xf32>
    %c6_26 = arith.constant 6 : index
    %c0_27 = arith.constant 0 : index
    %70 = vector.load %arg2[%c6_26, %c0_27] : memref<14x256xf32, #tpu.memory_space<vmem>>, vector<1x256xf32>
    %71 = vector.shape_cast %70 : vector<1x256xf32> to vector<256xf32>
    %72 = vector.shape_cast %71 : vector<256xf32> to vector<1x256xf32>
    %73 = vector.broadcast %72 : vector<1x256xf32> to vector<2x256xf32>
    %74 = arith.mulf %69, %73 : vector<2x256xf32>
    %c0_28 = arith.constant 0 : index
    %75 = memref.load %arg1[%c0_28] : memref<98xf32, #tpu.memory_space<smem>>
    %76 = vector.broadcast %75 : f32 to vector<2x256xf32>
    %77 = arith.mulf %76, %8 : vector<2x256xf32>
    %c1_29 = arith.constant 1 : index
    %78 = memref.load %arg1[%c1_29] : memref<98xf32, #tpu.memory_space<smem>>
    %79 = vector.broadcast %78 : f32 to vector<2x256xf32>
    %80 = arith.mulf %79, %14 : vector<2x256xf32>
    %c2_30 = arith.constant 2 : index
    %81 = memref.load %arg1[%c2_30] : memref<98xf32, #tpu.memory_space<smem>>
    %82 = vector.broadcast %81 : f32 to vector<2x256xf32>
    %83 = arith.mulf %82, %20 : vector<2x256xf32>
    %c3 = arith.constant 3 : index
    %84 = memref.load %arg1[%c3] : memref<98xf32, #tpu.memory_space<smem>>
    %85 = vector.broadcast %84 : f32 to vector<2x256xf32>
    %86 = arith.mulf %85, %1 : vector<2x256xf32>
    %c4_31 = arith.constant 4 : index
    %87 = memref.load %arg1[%c4_31] : memref<98xf32, #tpu.memory_space<smem>>
    %88 = vector.broadcast %87 : f32 to vector<2x256xf32>
    %89 = arith.mulf %88, %26 : vector<2x256xf32>
    %c5_32 = arith.constant 5 : index
    %90 = memref.load %arg1[%c5_32] : memref<98xf32, #tpu.memory_space<smem>>
    %91 = vector.broadcast %90 : f32 to vector<2x256xf32>
    %92 = arith.mulf %91, %32 : vector<2x256xf32>
    %c6_33 = arith.constant 6 : index
    %93 = memref.load %arg1[%c6_33] : memref<98xf32, #tpu.memory_space<smem>>
    %94 = vector.broadcast %93 : f32 to vector<2x256xf32>
    %95 = arith.mulf %94, %38 : vector<2x256xf32>
    %c49 = arith.constant 49 : index
    %96 = memref.load %arg1[%c49] : memref<98xf32, #tpu.memory_space<smem>>
    %97 = vector.broadcast %96 : f32 to vector<2x256xf32>
    %98 = arith.mulf %97, %44 : vector<2x256xf32>
    %c50 = arith.constant 50 : index
    %99 = memref.load %arg1[%c50] : memref<98xf32, #tpu.memory_space<smem>>
    %100 = vector.broadcast %99 : f32 to vector<2x256xf32>
    %101 = arith.mulf %100, %50 : vector<2x256xf32>
    %c51 = arith.constant 51 : index
    %102 = memref.load %arg1[%c51] : memref<98xf32, #tpu.memory_space<smem>>
    %103 = vector.broadcast %102 : f32 to vector<2x256xf32>
    %104 = arith.mulf %103, %56 : vector<2x256xf32>
    %c52 = arith.constant 52 : index
    %105 = memref.load %arg1[%c52] : memref<98xf32, #tpu.memory_space<smem>>
    %106 = vector.broadcast %105 : f32 to vector<2x256xf32>
    %107 = arith.mulf %106, %2 : vector<2x256xf32>
    %c53 = arith.constant 53 : index
    %108 = memref.load %arg1[%c53] : memref<98xf32, #tpu.memory_space<smem>>
    %109 = vector.broadcast %108 : f32 to vector<2x256xf32>
    %110 = arith.mulf %109, %62 : vector<2x256xf32>
    %c54 = arith.constant 54 : index
    %111 = memref.load %arg1[%c54] : memref<98xf32, #tpu.memory_space<smem>>
    %112 = vector.broadcast %111 : f32 to vector<2x256xf32>
    %113 = arith.mulf %112, %68 : vector<2x256xf32>
    %c55 = arith.constant 55 : index
    %114 = memref.load %arg1[%c55] : memref<98xf32, #tpu.memory_space<smem>>
    %115 = vector.broadcast %114 : f32 to vector<2x256xf32>
    %116 = arith.mulf %115, %74 : vector<2x256xf32>
    %117 = arith.addf %77, %80 : vector<2x256xf32>
    %118 = arith.addf %83, %86 : vector<2x256xf32>
    %119 = arith.addf %89, %92 : vector<2x256xf32>
    %120 = arith.addf %95, %98 : vector<2x256xf32>
    %121 = arith.addf %101, %104 : vector<2x256xf32>
    %122 = arith.addf %107, %110 : vector<2x256xf32>
    %123 = arith.addf %113, %116 : vector<2x256xf32>
    %124 = arith.addf %117, %118 : vector<2x256xf32>
    %125 = arith.addf %119, %120 : vector<2x256xf32>
    %126 = arith.addf %121, %122 : vector<2x256xf32>
    %127 = arith.addf %124, %125 : vector<2x256xf32>
    %128 = arith.addf %126, %123 : vector<2x256xf32>
    %129 = arith.addf %127, %128 : vector<2x256xf32>
    %c48_i32 = arith.constant 48 : i32
    %130 = tpu.dynamic_rotate %129 by %c48_i32 dim 1 : vector<2x256xf32>, i32 -> vector<2x256xf32>
    %c7 = arith.constant 7 : index
    %c0_34 = arith.constant 0 : index
    %131 = vector.load %arg2[%c7, %c0_34] : memref<14x256xf32, #tpu.memory_space<vmem>>, vector<1x256xf32>
    %132 = vector.shape_cast %131 : vector<1x256xf32> to vector<256xf32>
    %133 = vector.shape_cast %132 : vector<256xf32> to vector<1x256xf32>
    %134 = vector.broadcast %133 : vector<1x256xf32> to vector<2x256xf32>
    %135 = arith.mulf %130, %134 : vector<2x256xf32>
    %c7_35 = arith.constant 7 : index
    %136 = memref.load %arg1[%c7_35] : memref<98xf32, #tpu.memory_space<smem>>
    %137 = vector.broadcast %136 : f32 to vector<2x256xf32>
    %138 = arith.mulf %137, %8 : vector<2x256xf32>
    %c8 = arith.constant 8 : index
    %139 = memref.load %arg1[%c8] : memref<98xf32, #tpu.memory_space<smem>>
    %140 = vector.broadcast %139 : f32 to vector<2x256xf32>
    %141 = arith.mulf %140, %14 : vector<2x256xf32>
    %c9 = arith.constant 9 : index
    %142 = memref.load %arg1[%c9] : memref<98xf32, #tpu.memory_space<smem>>
    %143 = vector.broadcast %142 : f32 to vector<2x256xf32>
    %144 = arith.mulf %143, %20 : vector<2x256xf32>
    %c10 = arith.constant 10 : index
    %145 = memref.load %arg1[%c10] : memref<98xf32, #tpu.memory_space<smem>>
    %146 = vector.broadcast %145 : f32 to vector<2x256xf32>
    %147 = arith.mulf %146, %1 : vector<2x256xf32>
    %c11 = arith.constant 11 : index
    %148 = memref.load %arg1[%c11] : memref<98xf32, #tpu.memory_space<smem>>
    %149 = vector.broadcast %148 : f32 to vector<2x256xf32>
    %150 = arith.mulf %149, %26 : vector<2x256xf32>
    %c12 = arith.constant 12 : index
    %151 = memref.load %arg1[%c12] : memref<98xf32, #tpu.memory_space<smem>>
    %152 = vector.broadcast %151 : f32 to vector<2x256xf32>
    %153 = arith.mulf %152, %32 : vector<2x256xf32>
    %c13 = arith.constant 13 : index
    %154 = memref.load %arg1[%c13] : memref<98xf32, #tpu.memory_space<smem>>
    %155 = vector.broadcast %154 : f32 to vector<2x256xf32>
    %156 = arith.mulf %155, %38 : vector<2x256xf32>
    %c56 = arith.constant 56 : index
    %157 = memref.load %arg1[%c56] : memref<98xf32, #tpu.memory_space<smem>>
    %158 = vector.broadcast %157 : f32 to vector<2x256xf32>
    %159 = arith.mulf %158, %44 : vector<2x256xf32>
    %c57 = arith.constant 57 : index
    %160 = memref.load %arg1[%c57] : memref<98xf32, #tpu.memory_space<smem>>
    %161 = vector.broadcast %160 : f32 to vector<2x256xf32>
    %162 = arith.mulf %161, %50 : vector<2x256xf32>
    %c58 = arith.constant 58 : index
    %163 = memref.load %arg1[%c58] : memref<98xf32, #tpu.memory_space<smem>>
    %164 = vector.broadcast %163 : f32 to vector<2x256xf32>
    %165 = arith.mulf %164, %56 : vector<2x256xf32>
    %c59 = arith.constant 59 : index
    %166 = memref.load %arg1[%c59] : memref<98xf32, #tpu.memory_space<smem>>
    %167 = vector.broadcast %166 : f32 to vector<2x256xf32>
    %168 = arith.mulf %167, %2 : vector<2x256xf32>
    %c60 = arith.constant 60 : index
    %169 = memref.load %arg1[%c60] : memref<98xf32, #tpu.memory_space<smem>>
    %170 = vector.broadcast %169 : f32 to vector<2x256xf32>
    %171 = arith.mulf %170, %62 : vector<2x256xf32>
    %c61 = arith.constant 61 : index
    %172 = memref.load %arg1[%c61] : memref<98xf32, #tpu.memory_space<smem>>
    %173 = vector.broadcast %172 : f32 to vector<2x256xf32>
    %174 = arith.mulf %173, %68 : vector<2x256xf32>
    %c62 = arith.constant 62 : index
    %175 = memref.load %arg1[%c62] : memref<98xf32, #tpu.memory_space<smem>>
    %176 = vector.broadcast %175 : f32 to vector<2x256xf32>
    %177 = arith.mulf %176, %74 : vector<2x256xf32>
    %178 = arith.addf %138, %141 : vector<2x256xf32>
    %179 = arith.addf %144, %147 : vector<2x256xf32>
    %180 = arith.addf %150, %153 : vector<2x256xf32>
    %181 = arith.addf %156, %159 : vector<2x256xf32>
    %182 = arith.addf %162, %165 : vector<2x256xf32>
    %183 = arith.addf %168, %171 : vector<2x256xf32>
    %184 = arith.addf %174, %177 : vector<2x256xf32>
    %185 = arith.addf %178, %179 : vector<2x256xf32>
    %186 = arith.addf %180, %181 : vector<2x256xf32>
    %187 = arith.addf %182, %183 : vector<2x256xf32>
    %188 = arith.addf %185, %186 : vector<2x256xf32>
    %189 = arith.addf %187, %184 : vector<2x256xf32>
    %190 = arith.addf %188, %189 : vector<2x256xf32>
    %c32_i32 = arith.constant 32 : i32
    %191 = tpu.dynamic_rotate %190 by %c32_i32 dim 1 : vector<2x256xf32>, i32 -> vector<2x256xf32>
    %c8_36 = arith.constant 8 : index
    %c0_37 = arith.constant 0 : index
    %192 = vector.load %arg2[%c8_36, %c0_37] : memref<14x256xf32, #tpu.memory_space<vmem>>, vector<1x256xf32>
    %193 = vector.shape_cast %192 : vector<1x256xf32> to vector<256xf32>
    %194 = vector.shape_cast %193 : vector<256xf32> to vector<1x256xf32>
    %195 = vector.broadcast %194 : vector<1x256xf32> to vector<2x256xf32>
    %196 = arith.mulf %191, %195 : vector<2x256xf32>
    %c14 = arith.constant 14 : index
    %197 = memref.load %arg1[%c14] : memref<98xf32, #tpu.memory_space<smem>>
    %198 = vector.broadcast %197 : f32 to vector<2x256xf32>
    %199 = arith.mulf %198, %8 : vector<2x256xf32>
    %c15 = arith.constant 15 : index
    %200 = memref.load %arg1[%c15] : memref<98xf32, #tpu.memory_space<smem>>
    %201 = vector.broadcast %200 : f32 to vector<2x256xf32>
    %202 = arith.mulf %201, %14 : vector<2x256xf32>
    %c16 = arith.constant 16 : index
    %203 = memref.load %arg1[%c16] : memref<98xf32, #tpu.memory_space<smem>>
    %204 = vector.broadcast %203 : f32 to vector<2x256xf32>
    %205 = arith.mulf %204, %20 : vector<2x256xf32>
    %c17 = arith.constant 17 : index
    %206 = memref.load %arg1[%c17] : memref<98xf32, #tpu.memory_space<smem>>
    %207 = vector.broadcast %206 : f32 to vector<2x256xf32>
    %208 = arith.mulf %207, %1 : vector<2x256xf32>
    %c18 = arith.constant 18 : index
    %209 = memref.load %arg1[%c18] : memref<98xf32, #tpu.memory_space<smem>>
    %210 = vector.broadcast %209 : f32 to vector<2x256xf32>
    %211 = arith.mulf %210, %26 : vector<2x256xf32>
    %c19 = arith.constant 19 : index
    %212 = memref.load %arg1[%c19] : memref<98xf32, #tpu.memory_space<smem>>
    %213 = vector.broadcast %212 : f32 to vector<2x256xf32>
    %214 = arith.mulf %213, %32 : vector<2x256xf32>
    %c20 = arith.constant 20 : index
    %215 = memref.load %arg1[%c20] : memref<98xf32, #tpu.memory_space<smem>>
    %216 = vector.broadcast %215 : f32 to vector<2x256xf32>
    %217 = arith.mulf %216, %38 : vector<2x256xf32>
    %c63 = arith.constant 63 : index
    %218 = memref.load %arg1[%c63] : memref<98xf32, #tpu.memory_space<smem>>
    %219 = vector.broadcast %218 : f32 to vector<2x256xf32>
    %220 = arith.mulf %219, %44 : vector<2x256xf32>
    %c64 = arith.constant 64 : index
    %221 = memref.load %arg1[%c64] : memref<98xf32, #tpu.memory_space<smem>>
    %222 = vector.broadcast %221 : f32 to vector<2x256xf32>
    %223 = arith.mulf %222, %50 : vector<2x256xf32>
    %c65 = arith.constant 65 : index
    %224 = memref.load %arg1[%c65] : memref<98xf32, #tpu.memory_space<smem>>
    %225 = vector.broadcast %224 : f32 to vector<2x256xf32>
    %226 = arith.mulf %225, %56 : vector<2x256xf32>
    %c66 = arith.constant 66 : index
    %227 = memref.load %arg1[%c66] : memref<98xf32, #tpu.memory_space<smem>>
    %228 = vector.broadcast %227 : f32 to vector<2x256xf32>
    %229 = arith.mulf %228, %2 : vector<2x256xf32>
    %c67 = arith.constant 67 : index
    %230 = memref.load %arg1[%c67] : memref<98xf32, #tpu.memory_space<smem>>
    %231 = vector.broadcast %230 : f32 to vector<2x256xf32>
    %232 = arith.mulf %231, %62 : vector<2x256xf32>
    %c68 = arith.constant 68 : index
    %233 = memref.load %arg1[%c68] : memref<98xf32, #tpu.memory_space<smem>>
    %234 = vector.broadcast %233 : f32 to vector<2x256xf32>
    %235 = arith.mulf %234, %68 : vector<2x256xf32>
    %c69 = arith.constant 69 : index
    %236 = memref.load %arg1[%c69] : memref<98xf32, #tpu.memory_space<smem>>
    %237 = vector.broadcast %236 : f32 to vector<2x256xf32>
    %238 = arith.mulf %237, %74 : vector<2x256xf32>
    %239 = arith.addf %199, %202 : vector<2x256xf32>
    %240 = arith.addf %205, %208 : vector<2x256xf32>
    %241 = arith.addf %211, %214 : vector<2x256xf32>
    %242 = arith.addf %217, %220 : vector<2x256xf32>
    %243 = arith.addf %223, %226 : vector<2x256xf32>
    %244 = arith.addf %229, %232 : vector<2x256xf32>
    %245 = arith.addf %235, %238 : vector<2x256xf32>
    %246 = arith.addf %239, %240 : vector<2x256xf32>
    %247 = arith.addf %241, %242 : vector<2x256xf32>
    %248 = arith.addf %243, %244 : vector<2x256xf32>
    %249 = arith.addf %246, %247 : vector<2x256xf32>
    %250 = arith.addf %248, %245 : vector<2x256xf32>
    %251 = arith.addf %249, %250 : vector<2x256xf32>
    %c16_i32 = arith.constant 16 : i32
    %252 = tpu.dynamic_rotate %251 by %c16_i32 dim 1 : vector<2x256xf32>, i32 -> vector<2x256xf32>
    %c9_38 = arith.constant 9 : index
    %c0_39 = arith.constant 0 : index
    %253 = vector.load %arg2[%c9_38, %c0_39] : memref<14x256xf32, #tpu.memory_space<vmem>>, vector<1x256xf32>
    %254 = vector.shape_cast %253 : vector<1x256xf32> to vector<256xf32>
    %255 = vector.shape_cast %254 : vector<256xf32> to vector<1x256xf32>
    %256 = vector.broadcast %255 : vector<1x256xf32> to vector<2x256xf32>
    %257 = arith.mulf %252, %256 : vector<2x256xf32>
    %c21 = arith.constant 21 : index
    %258 = memref.load %arg1[%c21] : memref<98xf32, #tpu.memory_space<smem>>
    %259 = vector.broadcast %258 : f32 to vector<2x256xf32>
    %260 = arith.mulf %259, %8 : vector<2x256xf32>
    %c22 = arith.constant 22 : index
    %261 = memref.load %arg1[%c22] : memref<98xf32, #tpu.memory_space<smem>>
    %262 = vector.broadcast %261 : f32 to vector<2x256xf32>
    %263 = arith.mulf %262, %14 : vector<2x256xf32>
    %c23 = arith.constant 23 : index
    %264 = memref.load %arg1[%c23] : memref<98xf32, #tpu.memory_space<smem>>
    %265 = vector.broadcast %264 : f32 to vector<2x256xf32>
    %266 = arith.mulf %265, %20 : vector<2x256xf32>
    %c24 = arith.constant 24 : index
    %267 = memref.load %arg1[%c24] : memref<98xf32, #tpu.memory_space<smem>>
    %268 = vector.broadcast %267 : f32 to vector<2x256xf32>
    %269 = arith.mulf %268, %1 : vector<2x256xf32>
    %c25 = arith.constant 25 : index
    %270 = memref.load %arg1[%c25] : memref<98xf32, #tpu.memory_space<smem>>
    %271 = vector.broadcast %270 : f32 to vector<2x256xf32>
    %272 = arith.mulf %271, %26 : vector<2x256xf32>
    %c26 = arith.constant 26 : index
    %273 = memref.load %arg1[%c26] : memref<98xf32, #tpu.memory_space<smem>>
    %274 = vector.broadcast %273 : f32 to vector<2x256xf32>
    %275 = arith.mulf %274, %32 : vector<2x256xf32>
    %c27 = arith.constant 27 : index
    %276 = memref.load %arg1[%c27] : memref<98xf32, #tpu.memory_space<smem>>
    %277 = vector.broadcast %276 : f32 to vector<2x256xf32>
    %278 = arith.mulf %277, %38 : vector<2x256xf32>
    %c70 = arith.constant 70 : index
    %279 = memref.load %arg1[%c70] : memref<98xf32, #tpu.memory_space<smem>>
    %280 = vector.broadcast %279 : f32 to vector<2x256xf32>
    %281 = arith.mulf %280, %44 : vector<2x256xf32>
    %c71 = arith.constant 71 : index
    %282 = memref.load %arg1[%c71] : memref<98xf32, #tpu.memory_space<smem>>
    %283 = vector.broadcast %282 : f32 to vector<2x256xf32>
    %284 = arith.mulf %283, %50 : vector<2x256xf32>
    %c72 = arith.constant 72 : index
    %285 = memref.load %arg1[%c72] : memref<98xf32, #tpu.memory_space<smem>>
    %286 = vector.broadcast %285 : f32 to vector<2x256xf32>
    %287 = arith.mulf %286, %56 : vector<2x256xf32>
    %c73 = arith.constant 73 : index
    %288 = memref.load %arg1[%c73] : memref<98xf32, #tpu.memory_space<smem>>
    %289 = vector.broadcast %288 : f32 to vector<2x256xf32>
    %290 = arith.mulf %289, %2 : vector<2x256xf32>
    %c74 = arith.constant 74 : index
    %291 = memref.load %arg1[%c74] : memref<98xf32, #tpu.memory_space<smem>>
    %292 = vector.broadcast %291 : f32 to vector<2x256xf32>
    %293 = arith.mulf %292, %62 : vector<2x256xf32>
    %c75 = arith.constant 75 : index
    %294 = memref.load %arg1[%c75] : memref<98xf32, #tpu.memory_space<smem>>
    %295 = vector.broadcast %294 : f32 to vector<2x256xf32>
    %296 = arith.mulf %295, %68 : vector<2x256xf32>
    %c76 = arith.constant 76 : index
    %297 = memref.load %arg1[%c76] : memref<98xf32, #tpu.memory_space<smem>>
    %298 = vector.broadcast %297 : f32 to vector<2x256xf32>
    %299 = arith.mulf %298, %74 : vector<2x256xf32>
    %300 = arith.addf %260, %263 : vector<2x256xf32>
    %301 = arith.addf %266, %269 : vector<2x256xf32>
    %302 = arith.addf %272, %275 : vector<2x256xf32>
    %303 = arith.addf %278, %281 : vector<2x256xf32>
    %304 = arith.addf %284, %287 : vector<2x256xf32>
    %305 = arith.addf %290, %293 : vector<2x256xf32>
    %306 = arith.addf %296, %299 : vector<2x256xf32>
    %307 = arith.addf %300, %301 : vector<2x256xf32>
    %308 = arith.addf %302, %303 : vector<2x256xf32>
    %309 = arith.addf %304, %305 : vector<2x256xf32>
    %310 = arith.addf %307, %308 : vector<2x256xf32>
    %311 = arith.addf %309, %306 : vector<2x256xf32>
    %312 = arith.addf %310, %311 : vector<2x256xf32>
    %c28 = arith.constant 28 : index
    %313 = memref.load %arg1[%c28] : memref<98xf32, #tpu.memory_space<smem>>
    %314 = vector.broadcast %313 : f32 to vector<2x256xf32>
    %315 = arith.mulf %314, %8 : vector<2x256xf32>
    %c29 = arith.constant 29 : index
    %316 = memref.load %arg1[%c29] : memref<98xf32, #tpu.memory_space<smem>>
    %317 = vector.broadcast %316 : f32 to vector<2x256xf32>
    %318 = arith.mulf %317, %14 : vector<2x256xf32>
    %c30 = arith.constant 30 : index
    %319 = memref.load %arg1[%c30] : memref<98xf32, #tpu.memory_space<smem>>
    %320 = vector.broadcast %319 : f32 to vector<2x256xf32>
    %321 = arith.mulf %320, %20 : vector<2x256xf32>
    %c31 = arith.constant 31 : index
    %322 = memref.load %arg1[%c31] : memref<98xf32, #tpu.memory_space<smem>>
    %323 = vector.broadcast %322 : f32 to vector<2x256xf32>
    %324 = arith.mulf %323, %1 : vector<2x256xf32>
    %c32 = arith.constant 32 : index
    %325 = memref.load %arg1[%c32] : memref<98xf32, #tpu.memory_space<smem>>
    %326 = vector.broadcast %325 : f32 to vector<2x256xf32>
    %327 = arith.mulf %326, %26 : vector<2x256xf32>
    %c33 = arith.constant 33 : index
    %328 = memref.load %arg1[%c33] : memref<98xf32, #tpu.memory_space<smem>>
    %329 = vector.broadcast %328 : f32 to vector<2x256xf32>
    %330 = arith.mulf %329, %32 : vector<2x256xf32>
    %c34 = arith.constant 34 : index
    %331 = memref.load %arg1[%c34] : memref<98xf32, #tpu.memory_space<smem>>
    %332 = vector.broadcast %331 : f32 to vector<2x256xf32>
    %333 = arith.mulf %332, %38 : vector<2x256xf32>
    %c77 = arith.constant 77 : index
    %334 = memref.load %arg1[%c77] : memref<98xf32, #tpu.memory_space<smem>>
    %335 = vector.broadcast %334 : f32 to vector<2x256xf32>
    %336 = arith.mulf %335, %44 : vector<2x256xf32>
    %c78 = arith.constant 78 : index
    %337 = memref.load %arg1[%c78] : memref<98xf32, #tpu.memory_space<smem>>
    %338 = vector.broadcast %337 : f32 to vector<2x256xf32>
    %339 = arith.mulf %338, %50 : vector<2x256xf32>
    %c79 = arith.constant 79 : index
    %340 = memref.load %arg1[%c79] : memref<98xf32, #tpu.memory_space<smem>>
    %341 = vector.broadcast %340 : f32 to vector<2x256xf32>
    %342 = arith.mulf %341, %56 : vector<2x256xf32>
    %c80 = arith.constant 80 : index
    %343 = memref.load %arg1[%c80] : memref<98xf32, #tpu.memory_space<smem>>
    %344 = vector.broadcast %343 : f32 to vector<2x256xf32>
    %345 = arith.mulf %344, %2 : vector<2x256xf32>
    %c81 = arith.constant 81 : index
    %346 = memref.load %arg1[%c81] : memref<98xf32, #tpu.memory_space<smem>>
    %347 = vector.broadcast %346 : f32 to vector<2x256xf32>
    %348 = arith.mulf %347, %62 : vector<2x256xf32>
    %c82 = arith.constant 82 : index
    %349 = memref.load %arg1[%c82] : memref<98xf32, #tpu.memory_space<smem>>
    %350 = vector.broadcast %349 : f32 to vector<2x256xf32>
    %351 = arith.mulf %350, %68 : vector<2x256xf32>
    %c83 = arith.constant 83 : index
    %352 = memref.load %arg1[%c83] : memref<98xf32, #tpu.memory_space<smem>>
    %353 = vector.broadcast %352 : f32 to vector<2x256xf32>
    %354 = arith.mulf %353, %74 : vector<2x256xf32>
    %355 = arith.addf %315, %318 : vector<2x256xf32>
    %356 = arith.addf %321, %324 : vector<2x256xf32>
    %357 = arith.addf %327, %330 : vector<2x256xf32>
    %358 = arith.addf %333, %336 : vector<2x256xf32>
    %359 = arith.addf %339, %342 : vector<2x256xf32>
    %360 = arith.addf %345, %348 : vector<2x256xf32>
    %361 = arith.addf %351, %354 : vector<2x256xf32>
    %362 = arith.addf %355, %356 : vector<2x256xf32>
    %363 = arith.addf %357, %358 : vector<2x256xf32>
    %364 = arith.addf %359, %360 : vector<2x256xf32>
    %365 = arith.addf %362, %363 : vector<2x256xf32>
    %366 = arith.addf %364, %361 : vector<2x256xf32>
    %367 = arith.addf %365, %366 : vector<2x256xf32>
    %c240_i32 = arith.constant 240 : i32
    %368 = tpu.dynamic_rotate %367 by %c240_i32 dim 1 : vector<2x256xf32>, i32 -> vector<2x256xf32>
    %c11_40 = arith.constant 11 : index
    %c0_41 = arith.constant 0 : index
    %369 = vector.load %arg2[%c11_40, %c0_41] : memref<14x256xf32, #tpu.memory_space<vmem>>, vector<1x256xf32>
    %370 = vector.shape_cast %369 : vector<1x256xf32> to vector<256xf32>
    %371 = vector.shape_cast %370 : vector<256xf32> to vector<1x256xf32>
    %372 = vector.broadcast %371 : vector<1x256xf32> to vector<2x256xf32>
    %373 = arith.mulf %368, %372 : vector<2x256xf32>
    %c35 = arith.constant 35 : index
    %374 = memref.load %arg1[%c35] : memref<98xf32, #tpu.memory_space<smem>>
    %375 = vector.broadcast %374 : f32 to vector<2x256xf32>
    %376 = arith.mulf %375, %8 : vector<2x256xf32>
    %c36 = arith.constant 36 : index
    %377 = memref.load %arg1[%c36] : memref<98xf32, #tpu.memory_space<smem>>
    %378 = vector.broadcast %377 : f32 to vector<2x256xf32>
    %379 = arith.mulf %378, %14 : vector<2x256xf32>
    %c37 = arith.constant 37 : index
    %380 = memref.load %arg1[%c37] : memref<98xf32, #tpu.memory_space<smem>>
    %381 = vector.broadcast %380 : f32 to vector<2x256xf32>
    %382 = arith.mulf %381, %20 : vector<2x256xf32>
    %c38 = arith.constant 38 : index
    %383 = memref.load %arg1[%c38] : memref<98xf32, #tpu.memory_space<smem>>
    %384 = vector.broadcast %383 : f32 to vector<2x256xf32>
    %385 = arith.mulf %384, %1 : vector<2x256xf32>
    %c39 = arith.constant 39 : index
    %386 = memref.load %arg1[%c39] : memref<98xf32, #tpu.memory_space<smem>>
    %387 = vector.broadcast %386 : f32 to vector<2x256xf32>
    %388 = arith.mulf %387, %26 : vector<2x256xf32>
    %c40 = arith.constant 40 : index
    %389 = memref.load %arg1[%c40] : memref<98xf32, #tpu.memory_space<smem>>
    %390 = vector.broadcast %389 : f32 to vector<2x256xf32>
    %391 = arith.mulf %390, %32 : vector<2x256xf32>
    %c41 = arith.constant 41 : index
    %392 = memref.load %arg1[%c41] : memref<98xf32, #tpu.memory_space<smem>>
    %393 = vector.broadcast %392 : f32 to vector<2x256xf32>
    %394 = arith.mulf %393, %38 : vector<2x256xf32>
    %c84 = arith.constant 84 : index
    %395 = memref.load %arg1[%c84] : memref<98xf32, #tpu.memory_space<smem>>
    %396 = vector.broadcast %395 : f32 to vector<2x256xf32>
    %397 = arith.mulf %396, %44 : vector<2x256xf32>
    %c85 = arith.constant 85 : index
    %398 = memref.load %arg1[%c85] : memref<98xf32, #tpu.memory_space<smem>>
    %399 = vector.broadcast %398 : f32 to vector<2x256xf32>
    %400 = arith.mulf %399, %50 : vector<2x256xf32>
    %c86 = arith.constant 86 : index
    %401 = memref.load %arg1[%c86] : memref<98xf32, #tpu.memory_space<smem>>
    %402 = vector.broadcast %401 : f32 to vector<2x256xf32>
    %403 = arith.mulf %402, %56 : vector<2x256xf32>
    %c87 = arith.constant 87 : index
    %404 = memref.load %arg1[%c87] : memref<98xf32, #tpu.memory_space<smem>>
    %405 = vector.broadcast %404 : f32 to vector<2x256xf32>
    %406 = arith.mulf %405, %2 : vector<2x256xf32>
    %c88 = arith.constant 88 : index
    %407 = memref.load %arg1[%c88] : memref<98xf32, #tpu.memory_space<smem>>
    %408 = vector.broadcast %407 : f32 to vector<2x256xf32>
    %409 = arith.mulf %408, %62 : vector<2x256xf32>
    %c89 = arith.constant 89 : index
    %410 = memref.load %arg1[%c89] : memref<98xf32, #tpu.memory_space<smem>>
    %411 = vector.broadcast %410 : f32 to vector<2x256xf32>
    %412 = arith.mulf %411, %68 : vector<2x256xf32>
    %c90 = arith.constant 90 : index
    %413 = memref.load %arg1[%c90] : memref<98xf32, #tpu.memory_space<smem>>
    %414 = vector.broadcast %413 : f32 to vector<2x256xf32>
    %415 = arith.mulf %414, %74 : vector<2x256xf32>
    %416 = arith.addf %376, %379 : vector<2x256xf32>
    %417 = arith.addf %382, %385 : vector<2x256xf32>
    %418 = arith.addf %388, %391 : vector<2x256xf32>
    %419 = arith.addf %394, %397 : vector<2x256xf32>
    %420 = arith.addf %400, %403 : vector<2x256xf32>
    %421 = arith.addf %406, %409 : vector<2x256xf32>
    %422 = arith.addf %412, %415 : vector<2x256xf32>
    %423 = arith.addf %416, %417 : vector<2x256xf32>
    %424 = arith.addf %418, %419 : vector<2x256xf32>
    %425 = arith.addf %420, %421 : vector<2x256xf32>
    %426 = arith.addf %423, %424 : vector<2x256xf32>
    %427 = arith.addf %425, %422 : vector<2x256xf32>
    %428 = arith.addf %426, %427 : vector<2x256xf32>
    %c224_i32 = arith.constant 224 : i32
    %429 = tpu.dynamic_rotate %428 by %c224_i32 dim 1 : vector<2x256xf32>, i32 -> vector<2x256xf32>
    %c12_42 = arith.constant 12 : index
    %c0_43 = arith.constant 0 : index
    %430 = vector.load %arg2[%c12_42, %c0_43] : memref<14x256xf32, #tpu.memory_space<vmem>>, vector<1x256xf32>
    %431 = vector.shape_cast %430 : vector<1x256xf32> to vector<256xf32>
    %432 = vector.shape_cast %431 : vector<256xf32> to vector<1x256xf32>
    %433 = vector.broadcast %432 : vector<1x256xf32> to vector<2x256xf32>
    %434 = arith.mulf %429, %433 : vector<2x256xf32>
    %c42 = arith.constant 42 : index
    %435 = memref.load %arg1[%c42] : memref<98xf32, #tpu.memory_space<smem>>
    %436 = vector.broadcast %435 : f32 to vector<2x256xf32>
    %437 = arith.mulf %436, %8 : vector<2x256xf32>
    %c43 = arith.constant 43 : index
    %438 = memref.load %arg1[%c43] : memref<98xf32, #tpu.memory_space<smem>>
    %439 = vector.broadcast %438 : f32 to vector<2x256xf32>
    %440 = arith.mulf %439, %14 : vector<2x256xf32>
    %c44 = arith.constant 44 : index
    %441 = memref.load %arg1[%c44] : memref<98xf32, #tpu.memory_space<smem>>
    %442 = vector.broadcast %441 : f32 to vector<2x256xf32>
    %443 = arith.mulf %442, %20 : vector<2x256xf32>
    %c45 = arith.constant 45 : index
    %444 = memref.load %arg1[%c45] : memref<98xf32, #tpu.memory_space<smem>>
    %445 = vector.broadcast %444 : f32 to vector<2x256xf32>
    %446 = arith.mulf %445, %1 : vector<2x256xf32>
    %c46 = arith.constant 46 : index
    %447 = memref.load %arg1[%c46] : memref<98xf32, #tpu.memory_space<smem>>
    %448 = vector.broadcast %447 : f32 to vector<2x256xf32>
    %449 = arith.mulf %448, %26 : vector<2x256xf32>
    %c47 = arith.constant 47 : index
    %450 = memref.load %arg1[%c47] : memref<98xf32, #tpu.memory_space<smem>>
    %451 = vector.broadcast %450 : f32 to vector<2x256xf32>
    %452 = arith.mulf %451, %32 : vector<2x256xf32>
    %c48 = arith.constant 48 : index
    %453 = memref.load %arg1[%c48] : memref<98xf32, #tpu.memory_space<smem>>
    %454 = vector.broadcast %453 : f32 to vector<2x256xf32>
    %455 = arith.mulf %454, %38 : vector<2x256xf32>
    %c91 = arith.constant 91 : index
    %456 = memref.load %arg1[%c91] : memref<98xf32, #tpu.memory_space<smem>>
    %457 = vector.broadcast %456 : f32 to vector<2x256xf32>
    %458 = arith.mulf %457, %44 : vector<2x256xf32>
    %c92 = arith.constant 92 : index
    %459 = memref.load %arg1[%c92] : memref<98xf32, #tpu.memory_space<smem>>
    %460 = vector.broadcast %459 : f32 to vector<2x256xf32>
    %461 = arith.mulf %460, %50 : vector<2x256xf32>
    %c93 = arith.constant 93 : index
    %462 = memref.load %arg1[%c93] : memref<98xf32, #tpu.memory_space<smem>>
    %463 = vector.broadcast %462 : f32 to vector<2x256xf32>
    %464 = arith.mulf %463, %56 : vector<2x256xf32>
    %c94 = arith.constant 94 : index
    %465 = memref.load %arg1[%c94] : memref<98xf32, #tpu.memory_space<smem>>
    %466 = vector.broadcast %465 : f32 to vector<2x256xf32>
    %467 = arith.mulf %466, %2 : vector<2x256xf32>
    %c95 = arith.constant 95 : index
    %468 = memref.load %arg1[%c95] : memref<98xf32, #tpu.memory_space<smem>>
    %469 = vector.broadcast %468 : f32 to vector<2x256xf32>
    %470 = arith.mulf %469, %62 : vector<2x256xf32>
    %c96 = arith.constant 96 : index
    %471 = memref.load %arg1[%c96] : memref<98xf32, #tpu.memory_space<smem>>
    %472 = vector.broadcast %471 : f32 to vector<2x256xf32>
    %473 = arith.mulf %472, %68 : vector<2x256xf32>
    %c97 = arith.constant 97 : index
    %474 = memref.load %arg1[%c97] : memref<98xf32, #tpu.memory_space<smem>>
    %475 = vector.broadcast %474 : f32 to vector<2x256xf32>
    %476 = arith.mulf %475, %74 : vector<2x256xf32>
    %477 = arith.addf %437, %440 : vector<2x256xf32>
    %478 = arith.addf %443, %446 : vector<2x256xf32>
    %479 = arith.addf %449, %452 : vector<2x256xf32>
    %480 = arith.addf %455, %458 : vector<2x256xf32>
    %481 = arith.addf %461, %464 : vector<2x256xf32>
    %482 = arith.addf %467, %470 : vector<2x256xf32>
    %483 = arith.addf %473, %476 : vector<2x256xf32>
    %484 = arith.addf %477, %478 : vector<2x256xf32>
    %485 = arith.addf %479, %480 : vector<2x256xf32>
    %486 = arith.addf %481, %482 : vector<2x256xf32>
    %487 = arith.addf %484, %485 : vector<2x256xf32>
    %488 = arith.addf %486, %483 : vector<2x256xf32>
    %489 = arith.addf %487, %488 : vector<2x256xf32>
    %c208_i32 = arith.constant 208 : i32
    %490 = tpu.dynamic_rotate %489 by %c208_i32 dim 1 : vector<2x256xf32>, i32 -> vector<2x256xf32>
    %c13_44 = arith.constant 13 : index
    %c0_45 = arith.constant 0 : index
    %491 = vector.load %arg2[%c13_44, %c0_45] : memref<14x256xf32, #tpu.memory_space<vmem>>, vector<1x256xf32>
    %492 = vector.shape_cast %491 : vector<1x256xf32> to vector<256xf32>
    %493 = vector.shape_cast %492 : vector<256xf32> to vector<1x256xf32>
    %494 = vector.broadcast %493 : vector<1x256xf32> to vector<2x256xf32>
    %495 = arith.mulf %490, %494 : vector<2x256xf32>
    %496 = arith.addf %135, %196 : vector<2x256xf32>
    %497 = arith.addf %257, %312 : vector<2x256xf32>
    %498 = arith.addf %373, %434 : vector<2x256xf32>
    %499 = arith.addf %496, %497 : vector<2x256xf32>
    %500 = arith.addf %498, %495 : vector<2x256xf32>
    %501 = arith.addf %499, %500 : vector<2x256xf32>
    %502 = arith.negf %501 : vector<2x256xf32>
    %503 = math.exp %502 : vector<2x256xf32>
    %cst_46 = arith.constant 1.000000e+00 : f32
    %504 = vector.broadcast %cst_46 : f32 to vector<2x256xf32>
    %505 = arith.addf %504, %503 : vector<2x256xf32>
    %506 = arith.divf %504, %505 : vector<2x256xf32>
    %c0_47 = arith.constant 0 : index
    %c0_48 = arith.constant 0 : index
    %c0_49 = arith.constant 0 : index
    %507 = vector.load %arg3[%c0_47, %c0_48, %c0_49] : memref<2x4x256xf32, #tpu.memory_space<vmem>>, vector<2x4x256xf32>
    %508 = vector.shape_cast %506 : vector<2x256xf32> to vector<2x1x256xf32>
    %509 = vector.broadcast %508 : vector<2x1x256xf32> to vector<2x4x256xf32>
    %510 = arith.mulf %507, %509 : vector<2x4x256xf32>
    %c0_50 = arith.constant 0 : index
    %c0_51 = arith.constant 0 : index
    %c0_52 = arith.constant 0 : index
    %511 = vector.load %arg4[%c0_50, %c0_51, %c0_52] : memref<2x4x256xf32, #tpu.memory_space<vmem>>, vector<2x4x256xf32>
    tpu.vector_store %arg4[%c0_50, %c0_51, %c0_52], %510 {strides = array<i32>} : memref<2x4x256xf32, #tpu.memory_space<vmem>>, vector<2x4x256xf32>,
    return
  }
  func.func @transform_0(%arg0: i32) -> i32 {
    %c0_i32 = arith.constant 0 : i32
    %c0_i32_0 = arith.constant 0 : i32
    return %c0_i32 : i32
  }
  func.func @transform_1(%arg0: i32) -> (i32, i32) {
    %c0_i32 = arith.constant 0 : i32
    %c0_i32_0 = arith.constant 0 : i32
    %c0_i32_1 = arith.constant 0 : i32
    return %c0_i32, %c0_i32_0 : i32, i32
  }
  func.func @transform_2(%arg0: i32) -> (i32, i32, i32) {
    %c0_i32 = arith.constant 0 : i32
    %c0_i32_0 = arith.constant 0 : i32
    %c0_i32_1 = arith.constant 0 : i32
    return %arg0, %c0_i32, %c0_i32_0 : i32, i32, i32
  }
  func.func @transform_3(%arg0: i32) -> (i32, i32, i32) {
    %c0_i32 = arith.constant 0 : i32
    %c0_i32_0 = arith.constant 0 : i32
    %c0_i32_1 = arith.constant 0 : i32
    return %arg0, %c0_i32, %c0_i32_0 : i32, i32, i32
  }
}

</mosaic_0001>

<llo_original>
// kernel: tpu_custom_call.1
$region0: #{tpu_custom_call.1}
  #allocation0 [shape = 'u32[]', space=smem, size = 0x4, offset = 0x4, fixed_abs, tag = 'smem constant byte address 0x4 - core index']
  #allocation1 [shape = 'u32[72,128]{1,0:T(1,128)}', space=vmem, size = 0x9000, scoped, tag = 'internal scratch']
  %s0 = inlined_call_operand.hbm [shape: f32[98], index: 0, kind: input, shape index: {}]
  %s1 = inlined_call_operand.hbm [shape: f32[14,256], index: 1, kind: input, shape index: {}]
  %s2 = inlined_call_operand.hbm [shape: f32[2,4,256], index: 2, kind: input, shape index: {}]
  %s3 = inlined_call_operand.hbm [shape: f32[2,4,256], index: 3, kind: output, shape index: {}]
  %s4 = sld [smem:[#allocation0]]
  $region34: #{tpu_custom_call.1} parent=0
    _
  %s6 = ssub.s32 1, %s4
  %s7 = scalar_select 0, %s6, %s4
  $region1: #{tpu_custom_call.1} parent=0
    #allocation2 [shape = 'u8[512]{0}', space=smem, size = 0x200, scoped, tag = 'input window, operand 0, single buffered']
    #allocation3 [shape = 's32[1]{0}', space=sflag, size = 0x4, scoped, tag = 'scoped memory for tpu_custom_call.1']
    #allocation4 [shape = 's32[1]{0}', space=sflag, size = 0x4, scoped, tag = 'scoped memory for tpu_custom_call.1']
    #allocation5 [shape = 's32[1]{0}', space=sflag, size = 0x4, scoped, tag = 'scoped memory for tpu_custom_call.1']
    #allocation6 [shape = 'u8[16384]{0}', space=vmem, size = 0x4000, scoped, tag = 'input window, operand 1, single buffered']
    #allocation7 [shape = 'u8[8192]{0}', space=vmem, size = 0x2000, scoped, tag = 'input window, operand 2, single buffered']
    #allocation8 [shape = 's32[1]{0}', space=sflag, size = 0x4, scoped, tag = 'scoped memory for tpu_custom_call.1']
    #allocation9 [shape = 'u8[8192]{0}', space=vmem, size = 0x2000, scoped, tag = 'output window, operand 0, single buffered']
    %8 = vsyncpa [#allocation5], 0
    %9 = vsyncpa [#allocation3], 0
    %10 = vsyncpa [#allocation8], 0
    %11 = vsyncpa [#allocation4], 0
    // Predicated region
    $region2: #{tpu_custom_call.1} parent=1 // pred_check
      _
    $region3: #{tpu_custom_call.1} parent=1 // pred_check_branch
      %13 = sbr.rel (0) target = $region5
    $region4: #{tpu_custom_call.1} parent=1 // pred_region
      %15 = vsyncadd [#allocation5], 0
      %s17 = sshll.u32 %s0, 4
      %s18 = int_to_ptr.hbm [resolvable:$true] %s17
      %20 = dma.hbm_to_smem %s18, 16, [#allocation2], [#allocation5]
    $region5: #{tpu_custom_call.1} parent=1 // pred_fallthru
      _
    // Predicated region
    $region6: #{tpu_custom_call.1} parent=1 // pred_check
      _
    $region7: #{tpu_custom_call.1} parent=1 // pred_check_branch
      %22 = sbr.rel (0) target = $region9
    $region8: #{tpu_custom_call.1} parent=1 // pred_region
      %24 = vsyncadd [#allocation3], 0
      %s25 = sshll.u32 %s1, 4
      %s26 = int_to_ptr.hbm [resolvable:$true] %s25
      %s27 = sshll.u32 [#allocation6], 4
      %s28 = int_to_ptr.vmem [resolvable:$true] %s27
      %33 = dma.hbm_to_vmem [thread:$0]  %s26, 512, %s28, [#allocation3], 256, 256, 16
    $region9: #{tpu_custom_call.1} parent=1 // pred_fallthru
      _
    // Predicated region
    $region10: #{tpu_custom_call.1} parent=1 // pred_check
      _
    $region11: #{tpu_custom_call.1} parent=1 // pred_check_branch
      %35 = sbr.rel (0) target = $region13
    $region12: #{tpu_custom_call.1} parent=1 // pred_region
      %37 = vsyncadd [#allocation8], 0
      %s38 = sshll.u32 %s2, 4
      %s39 = int_to_ptr.hbm [resolvable:$true] %s38
      %s40 = sshll.u32 [#allocation7], 4
      %s41 = int_to_ptr.vmem [resolvable:$true] %s40
      %46 = dma.hbm_to_vmem [thread:$0]  %s39, 256, %s41, [#allocation8], 128, 128, 8
    $region13: #{tpu_custom_call.1} parent=1 // pred_fallthru
      _
    // Predicated region
    $region14: #{tpu_custom_call.1} parent=1 // pred_check
      _
    $region15: #{tpu_custom_call.1} parent=1 // pred_check_branch
      %48 = sbr.rel (0) target = $region17
    $region16: #{tpu_custom_call.1} parent=1 // pred_region
      %50 = dma.done [#allocation5], 16
    $region17: #{tpu_custom_call.1} parent=1 // pred_fallthru
      _
    // Predicated region
    $region18: #{tpu_custom_call.1} parent=1 // pred_check
      _
    $region19: #{tpu_custom_call.1} parent=1 // pred_check_branch
      %52 = sbr.rel (0) target = $region21
    $region20: #{tpu_custom_call.1} parent=1 // pred_region
      %54 = dma.done [#allocation3], 512
    $region21: #{tpu_custom_call.1} parent=1 // pred_fallthru
      _
    // Predicated region
    $region22: #{tpu_custom_call.1} parent=1 // pred_check
      _
    $region23: #{tpu_custom_call.1} parent=1 // pred_check_branch
      %56 = sbr.rel (0) target = $region25
    $region24: #{tpu_custom_call.1} parent=1 // pred_region
      %58 = dma.done [#allocation8], 256
    $region25: #{tpu_custom_call.1} parent=1 // pred_fallthru
      _
    %59 = sfence
    %v60 = vld [vmem:[#allocation7] sm:$0xff]
    %v61 = vld [vmem:[#allocation7 + $0x8] sm:$0xff]
    %64 = vst [vmem:[#allocation1] ss:$2 sm:$0xff] %v60
    %v65 = vld.sshfl [vmem:[#allocation1] sm:$0xff pattern:$0x75316420]
    %v66 = vld.sshfl [vmem:[#allocation1 + $0x8] sm:$0xff pattern:$0x75316420]
    %s67 = scalar_lea.vmem [#allocation1], 16
    %68 = vst [vmem:[%s67] ss:$2 sm:$0xff] %v61
    %v69 = vld.sshfl [vmem:[#allocation1 + $0x10] sm:$0xff pattern:$0x75316420]
    %v70 = vld.sshfl [vmem:[#allocation1 + $0x18] sm:$0xff pattern:$0x75316420]
    %vm75 = vcmask 1043456
    %v76 = vsel %vm75, %v65, 0.0
    %v77 = vrot.slane %v76, 4
    %v78 = vadd.f32 %v76, %v77
    %v79 = vrot.slane %v78, 2
    %v80 = vadd.f32 %v78, %v79
    %v81 = vrot.slane %v80, 1
    %v82 = vadd.f32 %v80, %v81
    %v83 = vsel %vm75, %v66, 0.0
    %v84 = vrot.slane %v83, 4
    %v85 = vadd.f32 %v83, %v84
    %v86 = vrot.slane %v85, 2
    %v87 = vadd.f32 %v85, %v86
    %v88 = vrot.slane %v87, 1
    %v89 = vadd.f32 %v87, %v88
    %v90 = vsel %vm75, %v69, 0.0
    %v91 = vrot.slane %v90, 4
    %v92 = vadd.f32 %v90, %v91
    %v93 = vrot.slane %v92, 2
    %v94 = vadd.f32 %v92, %v93
    %v95 = vrot.slane %v94, 1
    %v96 = vadd.f32 %v94, %v95
    %v97 = vsel %vm75, %v70, 0.0
    %v98 = vrot.slane %v97, 4
    %v99 = vadd.f32 %v97, %v98
    %v100 = vrot.slane %v99, 2
    %v101 = vadd.f32 %v99, %v100
    %v102 = vrot.slane %v101, 1
    %v103 = vadd.f32 %v101, %v102
    %104 = vst [vmem:[#allocation1] ss:$2 sm:$0xff] %v60
    %v105 = vld.sshfl [vmem:[#allocation1] sm:$0xff pattern:$0x75316420]
    %v106 = vld.sshfl [vmem:[#allocation1 + $0x8] sm:$0xff pattern:$0x75316420]
    %s107 = scalar_lea.vmem [#allocation1], 16
    %108 = vst [vmem:[%s107] ss:$2 sm:$0xff] %v61
    %v109 = vld.sshfl [vmem:[#allocation1 + $0x10] sm:$0xff pattern:$0x75316420]
    %v110 = vld.sshfl [vmem:[#allocation1 + $0x18] sm:$0xff pattern:$0x75316420]
    %v115 = vsel %vm75, %v105, -inf
    %v116 = vrot.slane %v115, 4
    %v117 = vmax.f32 %v115, %v116
    %v118 = vrot.slane %v117, 2
    %v119 = vmax.f32 %v117, %v118
    %v120 = vrot.slane %v119, 1
    %v121 = vmax.f32 %v119, %v120
    %v122 = vsel %vm75, %v106, -inf
    %v123 = vrot.slane %v122, 4
    %v124 = vmax.f32 %v122, %v123
    %v125 = vrot.slane %v124, 2
    %v126 = vmax.f32 %v124, %v125
    %v127 = vrot.slane %v126, 1
    %v128 = vmax.f32 %v126, %v127
    %v129 = vsel %vm75, %v109, -inf
    %v130 = vrot.slane %v129, 4
    %v131 = vmax.f32 %v129, %v130
    %v132 = vrot.slane %v131, 2
    %v133 = vmax.f32 %v131, %v132
    %v134 = vrot.slane %v133, 1
    %v135 = vmax.f32 %v133, %v134
    %v136 = vsel %vm75, %v110, -inf
    %v137 = vrot.slane %v136, 4
    %v138 = vmax.f32 %v136, %v137
    %v139 = vrot.slane %v138, 2
    %v140 = vmax.f32 %v138, %v139
    %v141 = vrot.slane %v140, 1
    %v142 = vmax.f32 %v140, %v141
    %vm147 = vcmask 1041409
    %v148 = vsel %vm147, %v96, %v82
    %v149 = vsel %vm147, %v103, %v89
    %152 = vrot.lane.b32.xlu0 %v148, 3
    %v153 = vpop.permute.xlu0 %152
    %154 = vrot.lane.b32.xlu0 %v149, 3
    %v155 = vpop.permute.xlu0 %154
    %v156 = vlaneseq
    %v157 = vand.u32 %v156, 127
    %vm158 = vcmp.lt.s32.totalorder %v157, 3
    %v159 = vsel %vm158, %v153, %v155
    %v160 = vsel %vm158, %v155, %v153
    %v161 = vld [vmem:[#allocation6] ss:$8 sm:$0x3]
    %v163 = vperm.slane %v161, 0
    %v164 = vperm.slane %v161, 1
    %v167 = vmul.f32 %v160, %v163
    %v168 = vmul.f32 %v159, %v164
    %169 = vrot.lane.b32.xlu0 %v148, 2
    %v170 = vpop.permute.xlu0 %169
    %171 = vrot.lane.b32.xlu0 %v149, 2
    %v172 = vpop.permute.xlu0 %171
    %vm173 = vcmp.lt.s32.totalorder %v157, 2
    %v174 = vsel %vm173, %v170, %v172
    %v175 = vsel %vm173, %v172, %v170
    %s176 = scalar_lea.vmem [#allocation6], 1
    %v177 = vld [vmem:[%s176] ss:$8 sm:$0x3]
    %v179 = vperm.slane %v177, 0
    %v180 = vperm.slane %v177, 1
    %v183 = vmul.f32 %v175, %v179
    %v184 = vmul.f32 %v174, %v180
    %185 = vrot.lane.b32.xlu0 %v148, 1
    %v186 = vpop.permute.xlu0 %185
    %187 = vrot.lane.b32.xlu0 %v149, 1
    %v188 = vpop.permute.xlu0 %187
    %vm189 = vcmp.lt.s32.totalorder %v157, 1
    %v190 = vsel %vm189, %v186, %v188
    %v191 = vsel %vm189, %v188, %v186
    %s192 = scalar_lea.vmem [#allocation6], 2
    %v193 = vld [vmem:[%s192] ss:$8 sm:$0x3]
    %v195 = vperm.slane %v193, 0
    %v196 = vperm.slane %v193, 1
    %v199 = vmul.f32 %v191, %v195
    %v200 = vmul.f32 %v190, %v196
    %201 = vrot.lane.b32.xlu0 %v148, 127
    %v202 = vpop.permute.xlu0 %201
    %203 = vrot.lane.b32.xlu0 %v149, 127
    %v204 = vpop.permute.xlu0 %203
    %vm205 = vcmp.lt.s32.totalorder %v157, 127
    %v206 = vsel %vm205, %v202, %v204
    %v207 = vsel %vm205, %v204, %v202
    %s208 = scalar_lea.vmem [#allocation6], 4
    %v209 = vld [vmem:[%s208] ss:$8 sm:$0x3]
    %v211 = vperm.slane %v209, 0
    %v212 = vperm.slane %v209, 1
    %v215 = vmul.f32 %v206, %v211
    %v216 = vmul.f32 %v207, %v212
    %217 = vrot.lane.b32.xlu0 %v148, 126
    %v218 = vpop.permute.xlu0 %217
    %219 = vrot.lane.b32.xlu0 %v149, 126
    %v220 = vpop.permute.xlu0 %219
    %vm221 = vcmp.lt.s32.totalorder %v157, 126
    %v222 = vsel %vm221, %v218, %v220
    %v223 = vsel %vm221, %v220, %v218
    %s224 = scalar_lea.vmem [#allocation6], 5
    %v225 = vld [vmem:[%s224] ss:$8 sm:$0x3]
    %v227 = vperm.slane %v225, 0
    %v228 = vperm.slane %v225, 1
    %v231 = vmul.f32 %v222, %v227
    %v232 = vmul.f32 %v223, %v228
    %233 = vrot.lane.b32.xlu0 %v148, 125
    %v234 = vpop.permute.xlu0 %233
    %235 = vrot.lane.b32.xlu0 %v149, 125
    %v236 = vpop.permute.xlu0 %235
    %vm237 = vcmp.lt.s32.totalorder %v157, 125
    %v238 = vsel %vm237, %v234, %v236
    %v239 = vsel %vm237, %v236, %v234
    %s240 = scalar_lea.vmem [#allocation6], 6
    %v241 = vld [vmem:[%s240] ss:$8 sm:$0x3]
    %v243 = vperm.slane %v241, 0
    %v244 = vperm.slane %v241, 1
    %v247 = vmul.f32 %v238, %v243
    %v248 = vmul.f32 %v239, %v244
    %v253 = vsel %vm147, %v135, %v121
    %v254 = vsel %vm147, %v142, %v128
    %257 = vrot.lane.b32.xlu0 %v253, 3
    %v258 = vpop.permute.xlu0 %257
    %259 = vrot.lane.b32.xlu0 %v254, 3
    %v260 = vpop.permute.xlu0 %259
    %v261 = vsel %vm158, %v258, %v260
    %v262 = vsel %vm158, %v260, %v258
    %v263 = vmul.f32 %v262, %v163
    %v264 = vmul.f32 %v261, %v164
    %265 = vrot.lane.b32.xlu0 %v253, 2
    %v266 = vpop.permute.xlu0 %265
    %267 = vrot.lane.b32.xlu0 %v254, 2
    %v268 = vpop.permute.xlu0 %267
    %v269 = vsel %vm173, %v266, %v268
    %v270 = vsel %vm173, %v268, %v266
    %v271 = vmul.f32 %v270, %v179
    %v272 = vmul.f32 %v269, %v180
    %273 = vrot.lane.b32.xlu0 %v253, 1
    %v274 = vpop.permute.xlu0 %273
    %275 = vrot.lane.b32.xlu0 %v254, 1
    %v276 = vpop.permute.xlu0 %275
    %v277 = vsel %vm189, %v274, %v276
    %v278 = vsel %vm189, %v276, %v274
    %v279 = vmul.f32 %v278, %v195
    %v280 = vmul.f32 %v277, %v196
    %281 = vrot.lane.b32.xlu0 %v253, 127
    %v282 = vpop.permute.xlu0 %281
    %283 = vrot.lane.b32.xlu0 %v254, 127
    %v284 = vpop.permute.xlu0 %283
    %v285 = vsel %vm205, %v282, %v284
    %v286 = vsel %vm205, %v284, %v282
    %v287 = vmul.f32 %v285, %v211
    %v288 = vmul.f32 %v286, %v212
    %289 = vrot.lane.b32.xlu0 %v253, 126
    %v290 = vpop.permute.xlu0 %289
    %291 = vrot.lane.b32.xlu0 %v254, 126
    %v292 = vpop.permute.xlu0 %291
    %v293 = vsel %vm221, %v290, %v292
    %v294 = vsel %vm221, %v292, %v290
    %v295 = vmul.f32 %v293, %v227
    %v296 = vmul.f32 %v294, %v228
    %297 = vrot.lane.b32.xlu0 %v253, 125
    %v298 = vpop.permute.xlu0 %297
    %299 = vrot.lane.b32.xlu0 %v254, 125
    %v300 = vpop.permute.xlu0 %299
    %v301 = vsel %vm237, %v298, %v300
    %v302 = vsel %vm237, %v300, %v298
    %v303 = vmul.f32 %v301, %v243
    %v304 = vmul.f32 %v302, %v244
    %s305 = sld [smem:[#allocation2]]
    %v306 = vstv %s305
    %v307 = vmul.f32 %v306, %v167
    %v308 = vmul.f32 %v306, %v168
    %s309 = sld [smem:[#allocation2 + $0x1]]
    %v310 = vstv %s309
    %v311 = vmul.f32 %v310, %v183
    %v312 = vmul.f32 %v310, %v184
    %s313 = sld [smem:[#allocation2 + $0x2]]
    %v314 = vstv %s313
    %v315 = vmul.f32 %v314, %v199
    %v316 = vmul.f32 %v314, %v200
    %s317 = sld [smem:[#allocation2 + $0x3]]
    %v318 = vstv %s317
    %v319 = vmul.f32 %v318, %v82
    %v320 = vmul.f32 %v318, %v89
    %v321 = vmul.f32 %v318, %v96
    %v322 = vmul.f32 %v318, %v103
    %s323 = sld [smem:[#allocation2 + $0x4]]
    %v324 = vstv %s323
    %v325 = vmul.f32 %v324, %v215
    %v326 = vmul.f32 %v324, %v216
    %s327 = sld [smem:[#allocation2 + $0x5]]
    %v328 = vstv %s327
    %v329 = vmul.f32 %v328, %v231
    %v330 = vmul.f32 %v328, %v232
    %s331 = sld [smem:[#allocation2 + $0x6]]
    %v332 = vstv %s331
    %v333 = vmul.f32 %v332, %v247
    %v334 = vmul.f32 %v332, %v248
    %s335 = sld [smem:[#allocation2 + $0x31]]
    %v336 = vstv %s335
    %v337 = vmul.f32 %v336, %v263
    %v338 = vmul.f32 %v336, %v264
    %s339 = sld [smem:[#allocation2 + $0x32]]
    %v340 = vstv %s339
    %v341 = vmul.f32 %v340, %v271
    %v342 = vmul.f32 %v340, %v272
    %s343 = sld [smem:[#allocation2 + $0x33]]
    %v344 = vstv %s343
    %v345 = vmul.f32 %v344, %v279
    %v346 = vmul.f32 %v344, %v280
    %s347 = sld [smem:[#allocation2 + $0x34]]
    %v348 = vstv %s347
    %v349 = vmul.f32 %v348, %v121
    %v350 = vmul.f32 %v348, %v128
    %v351 = vmul.f32 %v348, %v135
    %v352 = vmul.f32 %v348, %v142
    %s353 = sld [smem:[#allocation2 + $0x35]]
    %v354 = vstv %s353
    %v355 = vmul.f32 %v354, %v287
    %v356 = vmul.f32 %v354, %v288
    %s357 = sld [smem:[#allocation2 + $0x36]]
    %v358 = vstv %s357
    %v359 = vmul.f32 %v358, %v295
    %v360 = vmul.f32 %v358, %v296
    %s361 = sld [smem:[#allocation2 + $0x37]]
    %v362 = vstv %s361
    %v363 = vmul.f32 %v362, %v303
    %v364 = vmul.f32 %v362, %v304
    %v365 = vadd.f32 %v307, %v311
    %v366 = vadd.f32 %v308, %v312
    %v371 = vsel %vm147, %v321, %v319
    %v372 = vsel %vm147, %v322, %v320
    %v375 = vadd.f32 %v315, %v371
    %v376 = vadd.f32 %v316, %v372
    %v377 = vadd.f32 %v325, %v329
    %v378 = vadd.f32 %v326, %v330
    %v379 = vadd.f32 %v333, %v337
    %v380 = vadd.f32 %v334, %v338
    %v381 = vadd.f32 %v341, %v345
    %v382 = vadd.f32 %v342, %v346
    %v385 = vrot.slane %v355, 1
    %v386 = vrot.slane %v356, 1
    %v391 = vadd.f32 %v349, %v355
    %v392 = vadd.f32 %v350, %v356
    %v393 = vadd.f32 %v351, %v385
    %v394 = vadd.f32 %v352, %v386
    %v395 = vadd.f32 %v359, %v363
    %v396 = vadd.f32 %v360, %v364
    %v397 = vadd.f32 %v365, %v375
    %v398 = vadd.f32 %v366, %v376
    %v399 = vadd.f32 %v377, %v379
    %v400 = vadd.f32 %v378, %v380
    %v405 = vrot.slane %v393, 7
    %v406 = vsel %vm147, %v405, %v391
    %v407 = vrot.slane %v394, 7
    %v408 = vsel %vm147, %v407, %v392
    %v411 = vadd.f32 %v381, %v406
    %v412 = vadd.f32 %v382, %v408
    %v413 = vadd.f32 %v397, %v399
    %v414 = vadd.f32 %v398, %v400
    %v415 = vadd.f32 %v411, %v395
    %v416 = vadd.f32 %v412, %v396
    %v417 = vadd.f32 %v413, %v415
    %v418 = vadd.f32 %v414, %v416
    %419 = vrot.lane.b32.xlu0 %v417, 48
    %v420 = vpop.permute.xlu0 %419
    %421 = vrot.lane.b32.xlu0 %v418, 48
    %v422 = vpop.permute.xlu0 %421
    %vm423 = vcmp.lt.s32.totalorder %v157, 48
    %v424 = vsel %vm423, %v420, %v422
    %v425 = vsel %vm423, %v422, %v420
    %s426 = scalar_lea.vmem [#allocation6], 7
    %v427 = vld [vmem:[%s426] ss:$8 sm:$0x3]
    %v429 = vperm.slane %v427, 0
    %v430 = vperm.slane %v427, 1
    %v433 = vmul.f32 %v425, %v429
    %v434 = vmul.f32 %v424, %v430
    %s435 = sld [smem:[#allocation2 + $0x7]]
    %v436 = vstv %s435
    %v437 = vmul.f32 %v436, %v167
    %v438 = vmul.f32 %v436, %v168
    %s439 = sld [smem:[#allocation2 + $0x8]]
    %v440 = vstv %s439
    %v441 = vmul.f32 %v440, %v183
    %v442 = vmul.f32 %v440, %v184
    %s443 = sld [smem:[#allocation2 + $0x9]]
    %v444 = vstv %s443
    %v445 = vmul.f32 %v444, %v199
    %v446 = vmul.f32 %v444, %v200
    %s447 = sld [smem:[#allocation2 + $0xa]]
    %v448 = vstv %s447
    %v449 = vmul.f32 %v448, %v82
    %v450 = vmul.f32 %v448, %v89
    %v451 = vmul.f32 %v448, %v96
    %v452 = vmul.f32 %v448, %v103
    %s453 = sld [smem:[#allocation2 + $0xb]]
    %v454 = vstv %s453
    %v455 = vmul.f32 %v454, %v215
    %v456 = vmul.f32 %v454, %v216
    %s457 = sld [smem:[#allocation2 + $0xc]]
    %v458 = vstv %s457
    %v459 = vmul.f32 %v458, %v231
    %v460 = vmul.f32 %v458, %v232
    %s461 = sld [smem:[#allocation2 + $0xd]]
    %v462 = vstv %s461
    %v463 = vmul.f32 %v462, %v247
    %v464 = vmul.f32 %v462, %v248
    %s465 = sld [smem:[#allocation2 + $0x38]]
    %v466 = vstv %s465
    %v467 = vmul.f32 %v466, %v263
    %v468 = vmul.f32 %v466, %v264
    %s469 = sld [smem:[#allocation2 + $0x39]]
    %v470 = vstv %s469
    %v471 = vmul.f32 %v470, %v271
    %v472 = vmul.f32 %v470, %v272
    %s473 = sld [smem:[#allocation2 + $0x3a]]
    %v474 = vstv %s473
    %v475 = vmul.f32 %v474, %v279
    %v476 = vmul.f32 %v474, %v280
    %s477 = sld [smem:[#allocation2 + $0x3b]]
    %v478 = vstv %s477
    %v479 = vmul.f32 %v478, %v121
    %v480 = vmul.f32 %v478, %v128
    %v481 = vmul.f32 %v478, %v135
    %v482 = vmul.f32 %v478, %v142
    %s483 = sld [smem:[#allocation2 + $0x3c]]
    %v484 = vstv %s483
    %v485 = vmul.f32 %v484, %v287
    %v486 = vmul.f32 %v484, %v288
    %s487 = sld [smem:[#allocation2 + $0x3d]]
    %v488 = vstv %s487
    %v489 = vmul.f32 %v488, %v295
    %v490 = vmul.f32 %v488, %v296
    %s491 = sld [smem:[#allocation2 + $0x3e]]
    %v492 = vstv %s491
    %v493 = vmul.f32 %v492, %v303
    %v494 = vmul.f32 %v492, %v304
    %v495 = vadd.f32 %v437, %v441
    %v496 = vadd.f32 %v438, %v442
    %v501 = vsel %vm147, %v451, %v449
    %v502 = vsel %vm147, %v452, %v450
    %v505 = vadd.f32 %v445, %v501
    %v506 = vadd.f32 %v446, %v502
    %v507 = vadd.f32 %v455, %v459
    %v508 = vadd.f32 %v456, %v460
    %v509 = vadd.f32 %v463, %v467
    %v510 = vadd.f32 %v464, %v468
    %v511 = vadd.f32 %v471, %v475
    %v512 = vadd.f32 %v472, %v476
    %v515 = vrot.slane %v485, 1
    %v516 = vrot.slane %v486, 1
    %v521 = vadd.f32 %v479, %v485
    %v522 = vadd.f32 %v480, %v486
    %v523 = vadd.f32 %v481, %v515
    %v524 = vadd.f32 %v482, %v516
    %v525 = vadd.f32 %v489, %v493
    %v526 = vadd.f32 %v490, %v494
    %v527 = vadd.f32 %v495, %v505
    %v528 = vadd.f32 %v496, %v506
    %v529 = vadd.f32 %v507, %v509
    %v530 = vadd.f32 %v508, %v510
    %v535 = vrot.slane %v523, 7
    %v536 = vsel %vm147, %v535, %v521
    %v537 = vrot.slane %v524, 7
    %v538 = vsel %vm147, %v537, %v522
    %v541 = vadd.f32 %v511, %v536
    %v542 = vadd.f32 %v512, %v538
    %v543 = vadd.f32 %v527, %v529
    %v544 = vadd.f32 %v528, %v530
    %v545 = vadd.f32 %v541, %v525
    %v546 = vadd.f32 %v542, %v526
    %v547 = vadd.f32 %v543, %v545
    %v548 = vadd.f32 %v544, %v546
    %549 = vrot.lane.b32.xlu0 %v547, 32
    %v550 = vpop.permute.xlu0 %549
    %551 = vrot.lane.b32.xlu0 %v548, 32
    %v552 = vpop.permute.xlu0 %551
    %vm553 = vcmp.lt.s32.totalorder %v157, 32
    %v554 = vsel %vm553, %v550, %v552
    %v555 = vsel %vm553, %v552, %v550
    %s556 = scalar_lea.vmem [#allocation6], 16
    %v557 = vld [vmem:[%s556] ss:$8 sm:$0x3]
    %v559 = vperm.slane %v557, 0
    %v560 = vperm.slane %v557, 1
    %v563 = vmul.f32 %v555, %v559
    %v564 = vmul.f32 %v554, %v560
    %s565 = sld [smem:[#allocation2 + $0xe]]
    %v566 = vstv %s565
    %v567 = vmul.f32 %v566, %v167
    %v568 = vmul.f32 %v566, %v168
    %s569 = sld [smem:[#allocation2 + $0xf]]
    %v570 = vstv %s569
    %v571 = vmul.f32 %v570, %v183
    %v572 = vmul.f32 %v570, %v184
    %s573 = sld [smem:[#allocation2 + $0x10]]
    %v574 = vstv %s573
    %v575 = vmul.f32 %v574, %v199
    %v576 = vmul.f32 %v574, %v200
    %s577 = sld [smem:[#allocation2 + $0x11]]
    %v578 = vstv %s577
    %v579 = vmul.f32 %v578, %v82
    %v580 = vmul.f32 %v578, %v89
    %v581 = vmul.f32 %v578, %v96
    %v582 = vmul.f32 %v578, %v103
    %s583 = sld [smem:[#allocation2 + $0x12]]
    %v584 = vstv %s583
    %v585 = vmul.f32 %v584, %v215
    %v586 = vmul.f32 %v584, %v216
    %s587 = sld [smem:[#allocation2 + $0x13]]
    %v588 = vstv %s587
    %v589 = vmul.f32 %v588, %v231
    %v590 = vmul.f32 %v588, %v232
    %s591 = sld [smem:[#allocation2 + $0x14]]
    %v592 = vstv %s591
    %v593 = vmul.f32 %v592, %v247
    %v594 = vmul.f32 %v592, %v248
    %s595 = sld [smem:[#allocation2 + $0x3f]]
    %v596 = vstv %s595
    %v597 = vmul.f32 %v596, %v263
    %v598 = vmul.f32 %v596, %v264
    %s599 = sld [smem:[#allocation2 + $0x40]]
    %v600 = vstv %s599
    %v601 = vmul.f32 %v600, %v271
    %v602 = vmul.f32 %v600, %v272
    %s603 = sld [smem:[#allocation2 + $0x41]]
    %v604 = vstv %s603
    %v605 = vmul.f32 %v604, %v279
    %v606 = vmul.f32 %v604, %v280
    %s607 = sld [smem:[#allocation2 + $0x42]]
    %v608 = vstv %s607
    %v609 = vmul.f32 %v608, %v121
    %v610 = vmul.f32 %v608, %v128
    %v611 = vmul.f32 %v608, %v135
    %v612 = vmul.f32 %v608, %v142
    %s613 = sld [smem:[#allocation2 + $0x43]]
    %v614 = vstv %s613
    %v615 = vmul.f32 %v614, %v287
    %v616 = vmul.f32 %v614, %v288
    %s617 = sld [smem:[#allocation2 + $0x44]]
    %v618 = vstv %s617
    %v619 = vmul.f32 %v618, %v295
    %v620 = vmul.f32 %v618, %v296
    %s621 = sld [smem:[#allocation2 + $0x45]]
    %v622 = vstv %s621
    %v623 = vmul.f32 %v622, %v303
    %v624 = vmul.f32 %v622, %v304
    %v625 = vadd.f32 %v567, %v571
    %v626 = vadd.f32 %v568, %v572
    %v631 = vsel %vm147, %v581, %v579
    %v632 = vsel %vm147, %v582, %v580
    %v635 = vadd.f32 %v575, %v631
    %v636 = vadd.f32 %v576, %v632
    %v637 = vadd.f32 %v585, %v589
    %v638 = vadd.f32 %v586, %v590
    %v639 = vadd.f32 %v593, %v597
    %v640 = vadd.f32 %v594, %v598
    %v641 = vadd.f32 %v601, %v605
    %v642 = vadd.f32 %v602, %v606
    %v645 = vrot.slane %v615, 1
    %v646 = vrot.slane %v616, 1
    %v651 = vadd.f32 %v609, %v615
    %v652 = vadd.f32 %v610, %v616
    %v653 = vadd.f32 %v611, %v645
    %v654 = vadd.f32 %v612, %v646
    %v655 = vadd.f32 %v619, %v623
    %v656 = vadd.f32 %v620, %v624
    %v657 = vadd.f32 %v625, %v635
    %v658 = vadd.f32 %v626, %v636
    %v659 = vadd.f32 %v637, %v639
    %v660 = vadd.f32 %v638, %v640
    %v665 = vrot.slane %v653, 7
    %v666 = vsel %vm147, %v665, %v651
    %v667 = vrot.slane %v654, 7
    %v668 = vsel %vm147, %v667, %v652
    %v671 = vadd.f32 %v641, %v666
    %v672 = vadd.f32 %v642, %v668
    %v673 = vadd.f32 %v657, %v659
    %v674 = vadd.f32 %v658, %v660
    %v675 = vadd.f32 %v671, %v655
    %v676 = vadd.f32 %v672, %v656
    %v677 = vadd.f32 %v673, %v675
    %v678 = vadd.f32 %v674, %v676
    %679 = vrot.lane.b32.xlu0 %v677, 16
    %v680 = vpop.permute.xlu0 %679
    %681 = vrot.lane.b32.xlu0 %v678, 16
    %v682 = vpop.permute.xlu0 %681
    %vm683 = vcmp.lt.s32.totalorder %v157, 16
    %v684 = vsel %vm683, %v680, %v682
    %v685 = vsel %vm683, %v682, %v680
    %s686 = scalar_lea.vmem [#allocation6], 17
    %v687 = vld [vmem:[%s686] ss:$8 sm:$0x3]
    %v689 = vperm.slane %v687, 0
    %v690 = vperm.slane %v687, 1
    %v693 = vmul.f32 %v685, %v689
    %v694 = vmul.f32 %v684, %v690
    %s695 = sld [smem:[#allocation2 + $0x15]]
    %v696 = vstv %s695
    %v697 = vmul.f32 %v696, %v167
    %v698 = vmul.f32 %v696, %v168
    %s699 = sld [smem:[#allocation2 + $0x16]]
    %v700 = vstv %s699
    %v701 = vmul.f32 %v700, %v183
    %v702 = vmul.f32 %v700, %v184
    %s703 = sld [smem:[#allocation2 + $0x17]]
    %v704 = vstv %s703
    %v705 = vmul.f32 %v704, %v199
    %v706 = vmul.f32 %v704, %v200
    %s707 = sld [smem:[#allocation2 + $0x18]]
    %v708 = vstv %s707
    %v709 = vmul.f32 %v708, %v82
    %v710 = vmul.f32 %v708, %v89
    %v711 = vmul.f32 %v708, %v96
    %v712 = vmul.f32 %v708, %v103
    %s713 = sld [smem:[#allocation2 + $0x19]]
    %v714 = vstv %s713
    %v715 = vmul.f32 %v714, %v215
    %v716 = vmul.f32 %v714, %v216
    %s717 = sld [smem:[#allocation2 + $0x1a]]
    %v718 = vstv %s717
    %v719 = vmul.f32 %v718, %v231
    %v720 = vmul.f32 %v718, %v232
    %s721 = sld [smem:[#allocation2 + $0x1b]]
    %v722 = vstv %s721
    %v723 = vmul.f32 %v722, %v247
    %v724 = vmul.f32 %v722, %v248
    %s725 = sld [smem:[#allocation2 + $0x46]]
    %v726 = vstv %s725
    %v727 = vmul.f32 %v726, %v263
    %v728 = vmul.f32 %v726, %v264
    %s729 = sld [smem:[#allocation2 + $0x47]]
    %v730 = vstv %s729
    %v731 = vmul.f32 %v730, %v271
    %v732 = vmul.f32 %v730, %v272
    %s733 = sld [smem:[#allocation2 + $0x48]]
    %v734 = vstv %s733
    %v735 = vmul.f32 %v734, %v279
    %v736 = vmul.f32 %v734, %v280
    %s737 = sld [smem:[#allocation2 + $0x49]]
    %v738 = vstv %s737
    %v739 = vmul.f32 %v738, %v121
    %v740 = vmul.f32 %v738, %v128
    %v741 = vmul.f32 %v738, %v135
    %v742 = vmul.f32 %v738, %v142
    %s743 = sld [smem:[#allocation2 + $0x4a]]
    %v744 = vstv %s743
    %v745 = vmul.f32 %v744, %v287
    %v746 = vmul.f32 %v744, %v288
    %s747 = sld [smem:[#allocation2 + $0x4b]]
    %v748 = vstv %s747
    %v749 = vmul.f32 %v748, %v295
    %v750 = vmul.f32 %v748, %v296
    %s751 = sld [smem:[#allocation2 + $0x4c]]
    %v752 = vstv %s751
    %v753 = vmul.f32 %v752, %v303
    %v754 = vmul.f32 %v752, %v304
    %v755 = vadd.f32 %v697, %v701
    %v756 = vadd.f32 %v698, %v702
    %v761 = vsel %vm147, %v711, %v709
    %v762 = vsel %vm147, %v712, %v710
    %v765 = vadd.f32 %v705, %v761
    %v766 = vadd.f32 %v706, %v762
    %v767 = vadd.f32 %v715, %v719
    %v768 = vadd.f32 %v716, %v720
    %v769 = vadd.f32 %v723, %v727
    %v770 = vadd.f32 %v724, %v728
    %v771 = vadd.f32 %v731, %v735
    %v772 = vadd.f32 %v732, %v736
    %v775 = vrot.slane %v745, 1
    %v776 = vrot.slane %v746, 1
    %v781 = vadd.f32 %v739, %v745
    %v782 = vadd.f32 %v740, %v746
    %v783 = vadd.f32 %v741, %v775
    %v784 = vadd.f32 %v742, %v776
    %v785 = vadd.f32 %v749, %v753
    %v786 = vadd.f32 %v750, %v754
    %v787 = vadd.f32 %v755, %v765
    %v788 = vadd.f32 %v756, %v766
    %v789 = vadd.f32 %v767, %v769
    %v790 = vadd.f32 %v768, %v770
    %v795 = vrot.slane %v783, 7
    %v796 = vsel %vm147, %v795, %v781
    %v797 = vrot.slane %v784, 7
    %v798 = vsel %vm147, %v797, %v782
    %v801 = vadd.f32 %v771, %v796
    %v802 = vadd.f32 %v772, %v798
    %v803 = vadd.f32 %v787, %v789
    %v804 = vadd.f32 %v788, %v790
    %v805 = vadd.f32 %v801, %v785
    %v806 = vadd.f32 %v802, %v786
    %v807 = vadd.f32 %v803, %v805
    %v808 = vadd.f32 %v804, %v806
    %s809 = sld [smem:[#allocation2 + $0x1c]]
    %v810 = vstv %s809
    %v811 = vmul.f32 %v810, %v167
    %v812 = vmul.f32 %v810, %v168
    %s813 = sld [smem:[#allocation2 + $0x1d]]
    %v814 = vstv %s813
    %v815 = vmul.f32 %v814, %v183
    %v816 = vmul.f32 %v814, %v184
    %s817 = sld [smem:[#allocation2 + $0x1e]]
    %v818 = vstv %s817
    %v819 = vmul.f32 %v818, %v199
    %v820 = vmul.f32 %v818, %v200
    %s821 = sld [smem:[#allocation2 + $0x1f]]
    %v822 = vstv %s821
    %v823 = vmul.f32 %v822, %v82
    %v824 = vmul.f32 %v822, %v89
    %v825 = vmul.f32 %v822, %v96
    %v826 = vmul.f32 %v822, %v103
    %s827 = sld [smem:[#allocation2 + $0x20]]
    %v828 = vstv %s827
    %v829 = vmul.f32 %v828, %v215
    %v830 = vmul.f32 %v828, %v216
    %s831 = sld [smem:[#allocation2 + $0x21]]
    %v832 = vstv %s831
    %v833 = vmul.f32 %v832, %v231
    %v834 = vmul.f32 %v832, %v232
    %s835 = sld [smem:[#allocation2 + $0x22]]
    %v836 = vstv %s835
    %v837 = vmul.f32 %v836, %v247
    %v838 = vmul.f32 %v836, %v248
    %s839 = sld [smem:[#allocation2 + $0x4d]]
    %v840 = vstv %s839
    %v841 = vmul.f32 %v840, %v263
    %v842 = vmul.f32 %v840, %v264
    %s843 = sld [smem:[#allocation2 + $0x4e]]
    %v844 = vstv %s843
    %v845 = vmul.f32 %v844, %v271
    %v846 = vmul.f32 %v844, %v272
    %s847 = sld [smem:[#allocation2 + $0x4f]]
    %v848 = vstv %s847
    %v849 = vmul.f32 %v848, %v279
    %v850 = vmul.f32 %v848, %v280
    %s851 = sld [smem:[#allocation2 + $0x50]]
    %v852 = vstv %s851
    %v853 = vmul.f32 %v852, %v121
    %v854 = vmul.f32 %v852, %v128
    %v855 = vmul.f32 %v852, %v135
    %v856 = vmul.f32 %v852, %v142
    %s857 = sld [smem:[#allocation2 + $0x51]]
    %v858 = vstv %s857
    %v859 = vmul.f32 %v858, %v287
    %v860 = vmul.f32 %v858, %v288
    %s861 = sld [smem:[#allocation2 + $0x52]]
    %v862 = vstv %s861
    %v863 = vmul.f32 %v862, %v295
    %v864 = vmul.f32 %v862, %v296
    %s865 = sld [smem:[#allocation2 + $0x53]]
    %v866 = vstv %s865
    %v867 = vmul.f32 %v866, %v303
    %v868 = vmul.f32 %v866, %v304
    %v869 = vadd.f32 %v811, %v815
    %v870 = vadd.f32 %v812, %v816
    %v875 = vsel %vm147, %v825, %v823
    %v876 = vsel %vm147, %v826, %v824
    %v879 = vadd.f32 %v819, %v875
    %v880 = vadd.f32 %v820, %v876
    %v881 = vadd.f32 %v829, %v833
    %v882 = vadd.f32 %v830, %v834
    %v883 = vadd.f32 %v837, %v841
    %v884 = vadd.f32 %v838, %v842
    %v885 = vadd.f32 %v845, %v849
    %v886 = vadd.f32 %v846, %v850
    %v889 = vrot.slane %v859, 1
    %v890 = vrot.slane %v860, 1
    %v895 = vadd.f32 %v853, %v859
    %v896 = vadd.f32 %v854, %v860
    %v897 = vadd.f32 %v855, %v889
    %v898 = vadd.f32 %v856, %v890
    %v899 = vadd.f32 %v863, %v867
    %v900 = vadd.f32 %v864, %v868
    %v901 = vadd.f32 %v869, %v879
    %v902 = vadd.f32 %v870, %v880
    %v903 = vadd.f32 %v881, %v883
    %v904 = vadd.f32 %v882, %v884
    %v909 = vrot.slane %v897, 7
    %v910 = vsel %vm147, %v909, %v895
    %v911 = vrot.slane %v898, 7
    %v912 = vsel %vm147, %v911, %v896
    %v915 = vadd.f32 %v885, %v910
    %v916 = vadd.f32 %v886, %v912
    %v917 = vadd.f32 %v901, %v903
    %v918 = vadd.f32 %v902, %v904
    %v919 = vadd.f32 %v915, %v899
    %v920 = vadd.f32 %v916, %v900
    %v921 = vadd.f32 %v917, %v919
    %v922 = vadd.f32 %v918, %v920
    %923 = vrot.lane.b32.xlu0 %v921, 112
    %v924 = vpop.permute.xlu0 %923
    %925 = vrot.lane.b32.xlu0 %v922, 112
    %v926 = vpop.permute.xlu0 %925
    %vm927 = vcmp.lt.s32.totalorder %v157, 112
    %v928 = vsel %vm927, %v924, %v926
    %v929 = vsel %vm927, %v926, %v924
    %s930 = scalar_lea.vmem [#allocation6], 19
    %v931 = vld [vmem:[%s930] ss:$8 sm:$0x3]
    %v933 = vperm.slane %v931, 0
    %v934 = vperm.slane %v931, 1
    %v937 = vmul.f32 %v928, %v933
    %v938 = vmul.f32 %v929, %v934
    %s939 = sld [smem:[#allocation2 + $0x23]]
    %v940 = vstv %s939
    %v941 = vmul.f32 %v940, %v167
    %v942 = vmul.f32 %v940, %v168
    %s943 = sld [smem:[#allocation2 + $0x24]]
    %v944 = vstv %s943
    %v945 = vmul.f32 %v944, %v183
    %v946 = vmul.f32 %v944, %v184
    %s947 = sld [smem:[#allocation2 + $0x25]]
    %v948 = vstv %s947
    %v949 = vmul.f32 %v948, %v199
    %v950 = vmul.f32 %v948, %v200
    %s951 = sld [smem:[#allocation2 + $0x26]]
    %v952 = vstv %s951
    %v953 = vmul.f32 %v952, %v82
    %v954 = vmul.f32 %v952, %v89
    %v955 = vmul.f32 %v952, %v96
    %v956 = vmul.f32 %v952, %v103
    %s957 = sld [smem:[#allocation2 + $0x27]]
    %v958 = vstv %s957
    %v959 = vmul.f32 %v958, %v215
    %v960 = vmul.f32 %v958, %v216
    %s961 = sld [smem:[#allocation2 + $0x28]]
    %v962 = vstv %s961
    %v963 = vmul.f32 %v962, %v231
    %v964 = vmul.f32 %v962, %v232
    %s965 = sld [smem:[#allocation2 + $0x29]]
    %v966 = vstv %s965
    %v967 = vmul.f32 %v966, %v247
    %v968 = vmul.f32 %v966, %v248
    %s969 = sld [smem:[#allocation2 + $0x54]]
    %v970 = vstv %s969
    %v971 = vmul.f32 %v970, %v263
    %v972 = vmul.f32 %v970, %v264
    %s973 = sld [smem:[#allocation2 + $0x55]]
    %v974 = vstv %s973
    %v975 = vmul.f32 %v974, %v271
    %v976 = vmul.f32 %v974, %v272
    %s977 = sld [smem:[#allocation2 + $0x56]]
    %v978 = vstv %s977
    %v979 = vmul.f32 %v978, %v279
    %v980 = vmul.f32 %v978, %v280
    %s981 = sld [smem:[#allocation2 + $0x57]]
    %v982 = vstv %s981
    %v983 = vmul.f32 %v982, %v121
    %v984 = vmul.f32 %v982, %v128
    %v985 = vmul.f32 %v982, %v135
    %v986 = vmul.f32 %v982, %v142
    %s987 = sld [smem:[#allocation2 + $0x58]]
    %v988 = vstv %s987
    %v989 = vmul.f32 %v988, %v287
    %v990 = vmul.f32 %v988, %v288
    %s991 = sld [smem:[#allocation2 + $0x59]]
    %v992 = vstv %s991
    %v993 = vmul.f32 %v992, %v295
    %v994 = vmul.f32 %v992, %v296
    %s995 = sld [smem:[#allocation2 + $0x5a]]
    %v996 = vstv %s995
    %v997 = vmul.f32 %v996, %v303
    %v998 = vmul.f32 %v996, %v304
    %v999 = vadd.f32 %v941, %v945
    %v1000 = vadd.f32 %v942, %v946
    %v1005 = vsel %vm147, %v955, %v953
    %v1006 = vsel %vm147, %v956, %v954
    %v1009 = vadd.f32 %v949, %v1005
    %v1010 = vadd.f32 %v950, %v1006
    %v1011 = vadd.f32 %v959, %v963
    %v1012 = vadd.f32 %v960, %v964
    %v1013 = vadd.f32 %v967, %v971
    %v1014 = vadd.f32 %v968, %v972
    %v1015 = vadd.f32 %v975, %v979
    %v1016 = vadd.f32 %v976, %v980
    %v1019 = vrot.slane %v989, 1
    %v1020 = vrot.slane %v990, 1
    %v1025 = vadd.f32 %v983, %v989
    %v1026 = vadd.f32 %v984, %v990
    %v1027 = vadd.f32 %v985, %v1019
    %v1028 = vadd.f32 %v986, %v1020
    %v1029 = vadd.f32 %v993, %v997
    %v1030 = vadd.f32 %v994, %v998
    %v1031 = vadd.f32 %v999, %v1009
    %v1032 = vadd.f32 %v1000, %v1010
    %v1033 = vadd.f32 %v1011, %v1013
    %v1034 = vadd.f32 %v1012, %v1014
    %v1039 = vrot.slane %v1027, 7
    %v1040 = vsel %vm147, %v1039, %v1025
    %v1041 = vrot.slane %v1028, 7
    %v1042 = vsel %vm147, %v1041, %v1026
    %v1045 = vadd.f32 %v1015, %v1040
    %v1046 = vadd.f32 %v1016, %v1042
    %v1047 = vadd.f32 %v1031, %v1033
    %v1048 = vadd.f32 %v1032, %v1034
    %v1049 = vadd.f32 %v1045, %v1029
    %v1050 = vadd.f32 %v1046, %v1030
    %v1051 = vadd.f32 %v1047, %v1049
    %v1052 = vadd.f32 %v1048, %v1050
    %1053 = vrot.lane.b32.xlu0 %v1051, 96
    %v1054 = vpop.permute.xlu0 %1053
    %1055 = vrot.lane.b32.xlu0 %v1052, 96
    %v1056 = vpop.permute.xlu0 %1055
    %vm1057 = vcmp.lt.s32.totalorder %v157, 96
    %v1058 = vsel %vm1057, %v1054, %v1056
    %v1059 = vsel %vm1057, %v1056, %v1054
    %s1060 = scalar_lea.vmem [#allocation6], 20
    %v1061 = vld [vmem:[%s1060] ss:$8 sm:$0x3]
    %v1063 = vperm.slane %v1061, 0
    %v1064 = vperm.slane %v1061, 1
    %v1067 = vmul.f32 %v1058, %v1063
    %v1068 = vmul.f32 %v1059, %v1064
    %s1069 = sld [smem:[#allocation2 + $0x2a]]
    %v1070 = vstv %s1069
    %v1071 = vmul.f32 %v1070, %v167
    %v1072 = vmul.f32 %v1070, %v168
    %s1073 = sld [smem:[#allocation2 + $0x2b]]
    %v1074 = vstv %s1073
    %v1075 = vmul.f32 %v1074, %v183
    %v1076 = vmul.f32 %v1074, %v184
    %s1077 = sld [smem:[#allocation2 + $0x2c]]
    %v1078 = vstv %s1077
    %v1079 = vmul.f32 %v1078, %v199
    %v1080 = vmul.f32 %v1078, %v200
    %s1081 = sld [smem:[#allocation2 + $0x2d]]
    %v1082 = vstv %s1081
    %v1083 = vmul.f32 %v1082, %v82
    %v1084 = vmul.f32 %v1082, %v89
    %v1085 = vmul.f32 %v1082, %v96
    %v1086 = vmul.f32 %v1082, %v103
    %s1087 = sld [smem:[#allocation2 + $0x2e]]
    %v1088 = vstv %s1087
    %v1089 = vmul.f32 %v1088, %v215
    %v1090 = vmul.f32 %v1088, %v216
    %s1091 = sld [smem:[#allocation2 + $0x2f]]
    %v1092 = vstv %s1091
    %v1093 = vmul.f32 %v1092, %v231
    %v1094 = vmul.f32 %v1092, %v232
    %s1095 = sld [smem:[#allocation2 + $0x30]]
    %v1096 = vstv %s1095
    %v1097 = vmul.f32 %v1096, %v247
    %v1098 = vmul.f32 %v1096, %v248
    %s1099 = sld [smem:[#allocation2 + $0x5b]]
    %v1100 = vstv %s1099
    %v1101 = vmul.f32 %v1100, %v263
    %v1102 = vmul.f32 %v1100, %v264
    %s1103 = sld [smem:[#allocation2 + $0x5c]]
    %v1104 = vstv %s1103
    %v1105 = vmul.f32 %v1104, %v271
    %v1106 = vmul.f32 %v1104, %v272
    %s1107 = sld [smem:[#allocation2 + $0x5d]]
    %v1108 = vstv %s1107
    %v1109 = vmul.f32 %v1108, %v279
    %v1110 = vmul.f32 %v1108, %v280
    %s1111 = sld [smem:[#allocation2 + $0x5e]]
    %v1112 = vstv %s1111
    %v1113 = vmul.f32 %v1112, %v121
    %v1114 = vmul.f32 %v1112, %v128
    %v1115 = vmul.f32 %v1112, %v135
    %v1116 = vmul.f32 %v1112, %v142
    %s1117 = sld [smem:[#allocation2 + $0x5f]]
    %v1118 = vstv %s1117
    %v1119 = vmul.f32 %v1118, %v287
    %v1120 = vmul.f32 %v1118, %v288
    %s1121 = sld [smem:[#allocation2 + $0x60]]
    %v1122 = vstv %s1121
    %v1123 = vmul.f32 %v1122, %v295
    %v1124 = vmul.f32 %v1122, %v296
    %s1125 = sld [smem:[#allocation2 + $0x61]]
    %v1126 = vstv %s1125
    %v1127 = vmul.f32 %v1126, %v303
    %v1128 = vmul.f32 %v1126, %v304
    %v1129 = vadd.f32 %v1071, %v1075
    %v1130 = vadd.f32 %v1072, %v1076
    %v1135 = vsel %vm147, %v1085, %v1083
    %v1136 = vsel %vm147, %v1086, %v1084
    %v1139 = vadd.f32 %v1079, %v1135
    %v1140 = vadd.f32 %v1080, %v1136
    %v1141 = vadd.f32 %v1089, %v1093
    %v1142 = vadd.f32 %v1090, %v1094
    %v1143 = vadd.f32 %v1097, %v1101
    %v1144 = vadd.f32 %v1098, %v1102
    %v1145 = vadd.f32 %v1105, %v1109
    %v1146 = vadd.f32 %v1106, %v1110
    %v1149 = vrot.slane %v1119, 1
    %v1150 = vrot.slane %v1120, 1
    %v1155 = vadd.f32 %v1113, %v1119
    %v1156 = vadd.f32 %v1114, %v1120
    %v1157 = vadd.f32 %v1115, %v1149
    %v1158 = vadd.f32 %v1116, %v1150
    %v1159 = vadd.f32 %v1123, %v1127
    %v1160 = vadd.f32 %v1124, %v1128
    %v1161 = vadd.f32 %v1129, %v1139
    %v1162 = vadd.f32 %v1130, %v1140
    %v1163 = vadd.f32 %v1141, %v1143
    %v1164 = vadd.f32 %v1142, %v1144
    %v1169 = vrot.slane %v1157, 7
    %v1170 = vsel %vm147, %v1169, %v1155
    %v1171 = vrot.slane %v1158, 7
    %v1172 = vsel %vm147, %v1171, %v1156
    %v1175 = vadd.f32 %v1145, %v1170
    %v1176 = vadd.f32 %v1146, %v1172
    %v1177 = vadd.f32 %v1161, %v1163
    %v1178 = vadd.f32 %v1162, %v1164
    %v1179 = vadd.f32 %v1175, %v1159
    %v1180 = vadd.f32 %v1176, %v1160
    %v1181 = vadd.f32 %v1177, %v1179
    %v1182 = vadd.f32 %v1178, %v1180
    %1183 = vrot.lane.b32.xlu0 %v1181, 80
    %v1184 = vpop.permute.xlu0 %1183
    %1185 = vrot.lane.b32.xlu0 %v1182, 80
    %v1186 = vpop.permute.xlu0 %1185
    %vm1187 = vcmp.lt.s32.totalorder %v157, 80
    %v1188 = vsel %vm1187, %v1184, %v1186
    %v1189 = vsel %vm1187, %v1186, %v1184
    %s1190 = scalar_lea.vmem [#allocation6], 21
    %v1191 = vld [vmem:[%s1190] ss:$8 sm:$0x3]
    %v1193 = vperm.slane %v1191, 0
    %v1194 = vperm.slane %v1191, 1
    %v1197 = vmul.f32 %v1188, %v1193
    %v1198 = vmul.f32 %v1189, %v1194
    %v1199 = vadd.f32 %v433, %v563
    %v1200 = vadd.f32 %v434, %v564
    %v1201 = vadd.f32 %v693, %v807
    %v1202 = vadd.f32 %v694, %v808
    %v1203 = vadd.f32 %v937, %v1067
    %v1204 = vadd.f32 %v938, %v1068
    %v1205 = vadd.f32 %v1199, %v1201
    %v1206 = vadd.f32 %v1200, %v1202
    %v1207 = vadd.f32 %v1203, %v1197
    %v1208 = vadd.f32 %v1204, %v1198
    %v1209 = vadd.f32 %v1205, %v1207
    %v1210 = vadd.f32 %v1206, %v1208
    %v1211 = vxor.u32 %v1209, 2147483648
    %v1212 = vxor.u32 %v1210, 2147483648
    %v1213 = vmul.f32 %v1211, 1.442695
    %v1214 = vpow.pop %v1213
    %v1215 = vmul.f32 %v1212, 1.442695
    %v1216 = vpow.pop %v1215
    %v1217 = vadd.f32 %v1214, 1.0
    %v1218 = vadd.f32 %v1216, 1.0
    %v1219 = vrcp.pop %v1217
    %v1220 = vmul.f32 %v1217, %v1219
    %v1221 = vsub.f32 1.0, %v1220
    %v1222 = vmul.f32 %v1219, %v1221
    %v1223 = vadd.f32 %v1219, %v1222
    %vm1224 = vweird.f32 %v1217
    %vm1225 = vweird.f32 %v1219
    %vm1226 = vmor %vm1224, %vm1225
    %v1227 = vsel %vm1226, %v1219, %v1223
    %v1228 = vand.u32 2147483647, %v1217
    %vm1229 = vcmp.eq.f32.partialorder %v1228, 8.507059e+37
    %v1230 = vand.u32 %v1217, 2147483648
    %v1231 = vor.u32 1.1754944e-38, %v1230
    %v1232 = vsel %vm1229, %v1231, %v1227
    %v1233 = vmul.f32 1.0, %v1232
    %v1234 = vrcp.pop %v1218
    %v1235 = vmul.f32 %v1218, %v1234
    %v1236 = vsub.f32 1.0, %v1235
    %v1237 = vmul.f32 %v1234, %v1236
    %v1238 = vadd.f32 %v1234, %v1237
    %vm1239 = vweird.f32 %v1218
    %vm1240 = vweird.f32 %v1234
    %vm1241 = vmor %vm1239, %vm1240
    %v1242 = vsel %vm1241, %v1234, %v1238
    %v1243 = vand.u32 2147483647, %v1218
    %vm1244 = vcmp.eq.f32.partialorder %v1243, 8.507059e+37
    %v1245 = vand.u32 %v1218, 2147483648
    %v1246 = vor.u32 1.1754944e-38, %v1245
    %v1247 = vsel %vm1244, %v1246, %v1242
    %v1248 = vmul.f32 1.0, %v1247
    %v1251 = vrot.slane %v1248, 7
    %vm1252 = vcmask 1040384
    %v1253 = vsel %vm1252, %v1233, %v1251
    %v1254 = vsel %vm147, %v1233, %v1251
    %v1255 = vrot.slane %v1254, 1
    %v1256 = vperm.slane %v1253, 0
    %v1257 = vperm.slane %v1253, 1
    %v1258 = vperm.slane %v1255, 0
    %v1259 = vperm.slane %v1255, 1
    %v1260 = vrot.slane %v1257, 4
    %v1261 = vrot.slane %v1259, 4
    %v1262 = vsel %vm75, %v1256, %v1260
    %v1263 = vsel %vm75, %v1258, %v1261
    %v1266 = vmul.f32 %v60, %v1262
    %v1267 = vmul.f32 %v61, %v1263
    %1268 = vst [vmem:[#allocation9] sm:$0xff] %v1266
    %1269 = vst [vmem:[#allocation9 + $0x8] sm:$0xff] %v1267
    // Predicated region
    $region26: #{tpu_custom_call.1} parent=1 // pred_check
      _
    $region27: #{tpu_custom_call.1} parent=1 // pred_check_branch
      %1271 = sbr.rel (0) target = $region29
    $region28: #{tpu_custom_call.1} parent=1 // pred_region
      %1273 = vsyncadd [#allocation4], 0
      %s1274 = sshll.u32 [#allocation9], 4
      %s1275 = int_to_ptr.vmem [resolvable:$true] %s1274
      %s1276 = sshll.u32 %s3, 4
      %s1277 = int_to_ptr.hbm [resolvable:$true] %s1276
      %1282 = dma.vmem_to_hbm [thread:$0]  %s1275, 256, %s1277, [#allocation4], 128, 128, 8
    $region29: #{tpu_custom_call.1} parent=1 // pred_fallthru
      _
    // Predicated region
    $region30: #{tpu_custom_call.1} parent=1 // pred_check
      _
    $region31: #{tpu_custom_call.1} parent=1 // pred_check_branch
      %1284 = sbr.rel (0) target = $region33
    $region32: #{tpu_custom_call.1} parent=1 // pred_region
      %1286 = dma.done [#allocation4], 256
    $region33: #{tpu_custom_call.1} parent=1 // pred_fallthru
      _
    %1287 = vsyncpa [#allocation3], 1
    %1288 = vsyncpa [#allocation8], 1
    %1289 = vsyncpa [#allocation4], 1
    %1290 = vsyncpa [#allocation5], 1

</llo_original>
